<compile_context>
chip_gen: v6e
topology: v6e:2x2x1
jax: 0.10.0
libtpu: 0.0.40
codegen_flags: <defaults>
</compile_context>

<pallas_src>
import functools

import jax
import jax.numpy as jnp
from jax.experimental import pallas as pl
from jax.experimental.pallas import tpu as pltpu

K = 5           # transposed-conv kernel size
STRIDE = 2
PAD = K // 2    # = 2
OUT_PAD = 1
CIN = 2
CMID = 8
COUT = 2

# Phase decomposition: output row oy = 2*qy + ry gets contributions from input
# rows iy with 2*iy + ky == oy + 2 (ky in [0,5)).  With a 1-px zero border on
# the input (padded row p = iy + 1) the taps per parity ry are (dp, ky) pairs
# where the tap reads padded row qy + dp.
_PHASE_TAPS = {
    0: ((0, 4), (1, 2), (2, 0)),   # even outputs: 3 taps
    1: ((1, 3), (2, 1)),           # odd outputs : 2 taps
}


def _round_up(x, m):
    return ((x + m - 1) // m) * m


def _vmem_limit_bytes():
    """Generation-aware VMEM budget (review: don't hard-code 48 MiB)."""
    cap = None
    try:
        cap = int(getattr(pltpu.get_tpu_info(), "vmem_capacity_bytes", 0)) or None
    except Exception:
        cap = None
    if cap is None:
        cap = 64 * 1024 * 1024               # conservative (v7x physical size)
    # 3/4 of physical, capped, with headroom for Mosaic-internal scratch.
    return max(32 * 1024 * 1024, min((cap * 3) // 4, 100 * 1024 * 1024))


def _upscaler_kernel(x_ref, w1_ref, b1_ref, w2_ref, b2_ref, o_ref, *, wp2):
    # x_ref : (1, CIN, Finp)      VMEM  flat padded input (row-major, width wp2)
    # w1_ref: (CMID, CIN*K*K)     VMEM  ConvTranspose2d weights, col=(ic*K+ky)*K+kx
    # b1_ref: (CMID, 1)           VMEM
    # w2_ref: (CMID, COUT)        VMEM  1x1 conv weights, transposed
    # b2_ref: (COUT,)             SMEM
    # o_ref : (1, 2*2*COUT, Fp)   VMEM  flat phase planes, ch = (ry*2+rx)*COUT + d
    fp = o_ref.shape[2]

    # Hoist the 18 distinct tap slabs (2 ic x 3 dy x 3 dx).  In the flat layout
    # a tap is a pure lane shift of the input, shared by all phases and all
    # hidden channels (v2 reloaded each tap per hidden channel and per phase).
    taps = {}
    for ic in range(CIN):
        for dy in range(3):
            for dx in range(3):
                off = dy * wp2 + dx
                taps[(ic, dy, dx)] = x_ref[0, ic:ic + 1, off:off + fp]      # (1, fp)

    for ry in (0, 1):
        ytaps = _PHASE_TAPS[ry]
        for rx in (0, 1):
            xtaps = _PHASE_TAPS[rx]
            # Accumulate all CMID hidden channels at once on the sublane axis.
            acc = None
            for (dy, ky) in ytaps:
                for (dx, kx) in xtaps:
                    for ic in range(CIN):
                        col = (ic * K + ky) * K + kx
                        term = w1_ref[:, col:col + 1] * taps[(ic, dy, dx)]  # (CMID, fp)
                        acc = term if acc is None else acc + term
            h = jnp.tanh(acc + b1_ref[...])                                 # EUP, (CMID, fp)
            ch = (ry * 2 + rx) * COUT
            for d in range(COUT):
                prod = h * w2_ref[:, d:d + 1]                               # (CMID, fp)
                row = jnp.sum(prod, axis=0, keepdims=True) + b2_ref[d]      # (1, fp)
                o_ref[0, ch + d:ch + d + 1, :] = row.astype(o_ref.dtype)


def upscaler_burgers(x, wt, bt, w_out, b_out):
    """Forward pass.

    x     : (N, 2, H, W) float32
    wt    : (2, 8, 5, 5) ConvTranspose2d weight (PyTorch layout: in, out, kh, kw)
    bt    : (8,)
    w_out : (2, 8, 1, 1) Conv2d 1x1 weight (out, in, 1, 1)
    b_out : (2,)
    returns (N, 2, 2H, 2W) float32
    """
    n, c, h, w = x.shape
    assert c == CIN
    hp2, wp2 = h + 2, w + 2
    fin = hp2 * wp2                          # flat length of the bordered input
    f_out = h * wp2                          # flat output length (2 garbage cols/row)
    fp = _round_up(f_out, 128)               # lane-dense compute/store length
    maxoff = 2 * wp2 + 2                     # largest tap shift
    finp = _round_up(max(fin, maxoff + fp), 128)   # tail-padded (right/bottom only)

    # 1-px zero border, then flatten rows (width wp2) and zero-pad the tail so
    # every tap slice [off, off+fp) is in bounds and 128-aligned overall.
    xq = jnp.pad(x.astype(jnp.float32), ((0, 0), (0, 0), (1, 1), (1, 1)))
    xflat = xq.reshape(n, CIN, fin)
    xflat = jnp.pad(xflat, ((0, 0), (0, 0), (0, finp - fin)))

    # Weights: hidden channels on the sublane axis, taps on the lane axis.
    w1v = jnp.transpose(wt.astype(jnp.float32), (1, 0, 2, 3)).reshape(CMID, CIN * K * K)
    b1v = bt.astype(jnp.float32).reshape(CMID, 1)
    w2t = w_out[:, :, 0, 0].astype(jnp.float32).T            # (CMID, COUT)
    b2v = b_out.astype(jnp.float32)                          # (COUT,)

    kernel = functools.partial(_upscaler_kernel, wp2=wp2)

    phases = pl.pallas_call(
        kernel,
        out_shape=jax.ShapeDtypeStruct((n, 2 * 2 * COUT, fp), jnp.float32),
        grid=(n,),
        in_specs=[
            pl.BlockSpec((1, CIN, finp), lambda b: (b, 0, 0)),
            pl.BlockSpec((CMID, CIN * K * K), lambda b: (0, 0)),
            pl.BlockSpec((CMID, 1), lambda b: (0, 0)),
            pl.BlockSpec((CMID, COUT), lambda b: (0, 0)),
            pl.BlockSpec(memory_space=pltpu.MemorySpace.SMEM),
        ],
        out_specs=pl.BlockSpec((1, 2 * 2 * COUT, fp), lambda b: (b, 0, 0)),
        compiler_params=pltpu.CompilerParams(
            dimension_semantics=("parallel",),        # megacore-friendly on v7x
            vmem_limit_bytes=_vmem_limit_bytes(),
        ),
    )(xflat, w1v, b1v, w2t, b2v)

    # Interleave phase planes: (n, ry, rx, d, qy, qx) -> (n, d, 2h, 2w).
    out = phases[:, :, :f_out].reshape(n, 2, 2, COUT, h, wp2)[..., :w]
    out = jnp.transpose(out, (0, 3, 4, 1, 5, 2)).reshape(n, COUT, 2 * h, 2 * w)
    return out


def _reference(x, wt, bt, w_out, b_out):
    """Pure-JAX/XLA reference (independent code path: lhs-dilated conv)."""
    w_flip = jnp.transpose(wt[:, :, ::-1, ::-1], (1, 0, 2, 3))  # (CMID, CIN, K, K)
    y = jax.lax.conv_general_dilated(
        x, w_flip, window_strides=(1, 1),
        padding=[(K - 1 - PAD, K - 1 - PAD + OUT_PAD)] * 2,
        lhs_dilation=(STRIDE, STRIDE),
        dimension_numbers=("NCHW", "OIHW", "NCHW"))
    y = jnp.tanh(y + bt[None, :, None, None])
    z = jax.lax.conv_general_dilated(
        y, w_out, window_strides=(1, 1), padding=[(0, 0)] * 2,
        dimension_numbers=("NCHW", "OIHW", "NCHW"))
    return z + b_out[None, :, None, None]


if __name__ == "__main__":
    key = jax.random.PRNGKey(0)
    k1, k2, k3, k4, k5 = jax.random.split(key, 5)

    N, H, W = 2, 16, 16
    x = jax.random.normal(k1, (N, CIN, H, W), jnp.float32)

    # Deterministic parameter init (PyTorch-style uniform bounds).
    bound1 = 1.0 / (CMID * K * K) ** 0.5
    wt = jax.random.uniform(k2, (CIN, CMID, K, K), jnp.float32, -bound1, bound1)
    bt = jax.random.uniform(k3, (CMID,), jnp.float32, -bound1, bound1)
    bound2 = 1.0 / CMID ** 0.5
    w_out = jax.random.uniform(k4, (COUT, CMID, 1, 1), jnp.float32, -bound2, bound2)
    b_out = jax.random.uniform(k5, (COUT,), jnp.float32, -bound2, bound2)

    fwd = jax.jit(upscaler_burgers)
    out = jax.block_until_ready(fwd(x, wt, bt, w_out, b_out))
    assert out.shape == (N, COUT, 2 * H, 2 * W)

    ref = _reference(x, wt, bt, w_out, b_out)
    max_err = float(jnp.max(jnp.abs(out - ref)))
    assert max_err < 5e-4, max_err

    print("KERNEL_OK")
</pallas_src>

<mosaic_0001>
module attributes {stable_mosaic.version = 11 : i64} {
  func.func @_upscaler_kernel(%arg0: i32, %arg1: memref<1x2x512xf32, #tpu.memory_space<vmem>>, %arg2: memref<8x50xf32, #tpu.memory_space<vmem>>, %arg3: memref<8x1xf32, #tpu.memory_space<vmem>>, %arg4: memref<8x2xf32, #tpu.memory_space<vmem>>, %arg5: memref<2xf32, #tpu.memory_space<smem>>, %arg6: memref<1x8x384xf32, #tpu.memory_space<vmem>>) attributes {dimension_semantics = [#tpu.dimension_semantics<parallel>], iteration_bounds = array<i64: 2>, scalar_prefetch = 0 : i64, scratch_operands = 0 : i64, tpu.core_type = #tpu.core_type<tc>, window_params = [{transform_indices = @transform_0, window_bounds = array<i64: 1, 2, 512>}, {pipeline_mode = #tpu.pipeline_mode<synchronous>, transform_indices = @transform_1, window_bounds = array<i64: 8, 50>}, {pipeline_mode = #tpu.pipeline_mode<synchronous>, transform_indices = @transform_2, window_bounds = array<i64: 8, 1>}, {pipeline_mode = #tpu.pipeline_mode<synchronous>, transform_indices = @transform_3, window_bounds = array<i64: 8, 2>}, {transform_indices = @transform_4, window_bounds = array<i64: 2>}, {transform_indices = @transform_5, window_bounds = array<i64: 1, 8, 384>}]} {
    %c0 = arith.constant 0 : index
    %c0_0 = arith.constant 0 : index
    %c0_1 = arith.constant 0 : index
    %0 = vector.load %arg1[%c0, %c0_0, %c0_1] : memref<1x2x512xf32, #tpu.memory_space<vmem>>, vector<1x1x384xf32>
    %1 = vector.shape_cast %0 : vector<1x1x384xf32> to vector<1x384xf32>
    %c0_2 = arith.constant 0 : index
    %c0_3 = arith.constant 0 : index
    %c1 = arith.constant 1 : index
    %2 = vector.load %arg1[%c0_2, %c0_3, %c1] : memref<1x2x512xf32, #tpu.memory_space<vmem>>, vector<1x1x384xf32>
    %3 = vector.shape_cast %2 : vector<1x1x384xf32> to vector<1x384xf32>
    %c0_4 = arith.constant 0 : index
    %c0_5 = arith.constant 0 : index
    %c2 = arith.constant 2 : index
    %4 = vector.load %arg1[%c0_4, %c0_5, %c2] : memref<1x2x512xf32, #tpu.memory_space<vmem>>, vector<1x1x384xf32>
    %5 = vector.shape_cast %4 : vector<1x1x384xf32> to vector<1x384xf32>
    %c0_6 = arith.constant 0 : index
    %c0_7 = arith.constant 0 : index
    %c18 = arith.constant 18 : index
    %6 = vector.load %arg1[%c0_6, %c0_7, %c18] : memref<1x2x512xf32, #tpu.memory_space<vmem>>, vector<1x1x384xf32>
    %7 = vector.shape_cast %6 : vector<1x1x384xf32> to vector<1x384xf32>
    %c0_8 = arith.constant 0 : index
    %c0_9 = arith.constant 0 : index
    %c19 = arith.constant 19 : index
    %8 = vector.load %arg1[%c0_8, %c0_9, %c19] : memref<1x2x512xf32, #tpu.memory_space<vmem>>, vector<1x1x384xf32>
    %9 = vector.shape_cast %8 : vector<1x1x384xf32> to vector<1x384xf32>
    %c0_10 = arith.constant 0 : index
    %c0_11 = arith.constant 0 : index
    %c20 = arith.constant 20 : index
    %10 = vector.load %arg1[%c0_10, %c0_11, %c20] : memref<1x2x512xf32, #tpu.memory_space<vmem>>, vector<1x1x384xf32>
    %11 = vector.shape_cast %10 : vector<1x1x384xf32> to vector<1x384xf32>
    %c0_12 = arith.constant 0 : index
    %c0_13 = arith.constant 0 : index
    %c36 = arith.constant 36 : index
    %12 = vector.load %arg1[%c0_12, %c0_13, %c36] : memref<1x2x512xf32, #tpu.memory_space<vmem>>, vector<1x1x384xf32>
    %13 = vector.shape_cast %12 : vector<1x1x384xf32> to vector<1x384xf32>
    %c0_14 = arith.constant 0 : index
    %c0_15 = arith.constant 0 : index
    %c37 = arith.constant 37 : index
    %14 = vector.load %arg1[%c0_14, %c0_15, %c37] : memref<1x2x512xf32, #tpu.memory_space<vmem>>, vector<1x1x384xf32>
    %15 = vector.shape_cast %14 : vector<1x1x384xf32> to vector<1x384xf32>
    %c0_16 = arith.constant 0 : index
    %c0_17 = arith.constant 0 : index
    %c38 = arith.constant 38 : index
    %16 = vector.load %arg1[%c0_16, %c0_17, %c38] : memref<1x2x512xf32, #tpu.memory_space<vmem>>, vector<1x1x384xf32>
    %17 = vector.shape_cast %16 : vector<1x1x384xf32> to vector<1x384xf32>
    %c0_18 = arith.constant 0 : index
    %c1_19 = arith.constant 1 : index
    %c0_20 = arith.constant 0 : index
    %18 = vector.load %arg1[%c0_18, %c1_19, %c0_20] : memref<1x2x512xf32, #tpu.memory_space<vmem>>, vector<1x1x384xf32>
    %19 = vector.shape_cast %18 : vector<1x1x384xf32> to vector<1x384xf32>
    %c0_21 = arith.constant 0 : index
    %c1_22 = arith.constant 1 : index
    %c1_23 = arith.constant 1 : index
    %20 = vector.load %arg1[%c0_21, %c1_22, %c1_23] : memref<1x2x512xf32, #tpu.memory_space<vmem>>, vector<1x1x384xf32>
    %21 = vector.shape_cast %20 : vector<1x1x384xf32> to vector<1x384xf32>
    %c0_24 = arith.constant 0 : index
    %c1_25 = arith.constant 1 : index
    %c2_26 = arith.constant 2 : index
    %22 = vector.load %arg1[%c0_24, %c1_25, %c2_26] : memref<1x2x512xf32, #tpu.memory_space<vmem>>, vector<1x1x384xf32>
    %23 = vector.shape_cast %22 : vector<1x1x384xf32> to vector<1x384xf32>
    %c0_27 = arith.constant 0 : index
    %c1_28 = arith.constant 1 : index
    %c18_29 = arith.constant 18 : index
    %24 = vector.load %arg1[%c0_27, %c1_28, %c18_29] : memref<1x2x512xf32, #tpu.memory_space<vmem>>, vector<1x1x384xf32>
    %25 = vector.shape_cast %24 : vector<1x1x384xf32> to vector<1x384xf32>
    %c0_30 = arith.constant 0 : index
    %c1_31 = arith.constant 1 : index
    %c19_32 = arith.constant 19 : index
    %26 = vector.load %arg1[%c0_30, %c1_31, %c19_32] : memref<1x2x512xf32, #tpu.memory_space<vmem>>, vector<1x1x384xf32>
    %27 = vector.shape_cast %26 : vector<1x1x384xf32> to vector<1x384xf32>
    %c0_33 = arith.constant 0 : index
    %c1_34 = arith.constant 1 : index
    %c20_35 = arith.constant 20 : index
    %28 = vector.load %arg1[%c0_33, %c1_34, %c20_35] : memref<1x2x512xf32, #tpu.memory_space<vmem>>, vector<1x1x384xf32>
    %29 = vector.shape_cast %28 : vector<1x1x384xf32> to vector<1x384xf32>
    %c0_36 = arith.constant 0 : index
    %c1_37 = arith.constant 1 : index
    %c36_38 = arith.constant 36 : index
    %30 = vector.load %arg1[%c0_36, %c1_37, %c36_38] : memref<1x2x512xf32, #tpu.memory_space<vmem>>, vector<1x1x384xf32>
    %31 = vector.shape_cast %30 : vector<1x1x384xf32> to vector<1x384xf32>
    %c0_39 = arith.constant 0 : index
    %c1_40 = arith.constant 1 : index
    %c37_41 = arith.constant 37 : index
    %32 = vector.load %arg1[%c0_39, %c1_40, %c37_41] : memref<1x2x512xf32, #tpu.memory_space<vmem>>, vector<1x1x384xf32>
    %33 = vector.shape_cast %32 : vector<1x1x384xf32> to vector<1x384xf32>
    %c0_42 = arith.constant 0 : index
    %c1_43 = arith.constant 1 : index
    %c38_44 = arith.constant 38 : index
    %34 = vector.load %arg1[%c0_42, %c1_43, %c38_44] : memref<1x2x512xf32, #tpu.memory_space<vmem>>, vector<1x1x384xf32>
    %35 = vector.shape_cast %34 : vector<1x1x384xf32> to vector<1x384xf32>
    %c0_45 = arith.constant 0 : index
    %c24 = arith.constant 24 : index
    %36 = vector.load %arg2[%c0_45, %c24] : memref<8x50xf32, #tpu.memory_space<vmem>>, vector<8x1xf32>
    %37 = vector.broadcast %36 : vector<8x1xf32> to vector<8x384xf32>
    %38 = vector.broadcast %1 : vector<1x384xf32> to vector<8x384xf32>
    %39 = arith.mulf %37, %38 : vector<8x384xf32>
    %c0_46 = arith.constant 0 : index
    %c49 = arith.constant 49 : index
    %40 = vector.load %arg2[%c0_46, %c49] : memref<8x50xf32, #tpu.memory_space<vmem>>, vector<8x1xf32>
    %41 = vector.broadcast %40 : vector<8x1xf32> to vector<8x384xf32>
    %42 = vector.broadcast %19 : vector<1x384xf32> to vector<8x384xf32>
    %43 = arith.mulf %41, %42 : vector<8x384xf32>
    %44 = arith.addf %39, %43 : vector<8x384xf32>
    %c0_47 = arith.constant 0 : index
    %c22 = arith.constant 22 : index
    %45 = vector.load %arg2[%c0_47, %c22] : memref<8x50xf32, #tpu.memory_space<vmem>>, vector<8x1xf32>
    %46 = vector.broadcast %45 : vector<8x1xf32> to vector<8x384xf32>
    %47 = vector.broadcast %3 : vector<1x384xf32> to vector<8x384xf32>
    %48 = arith.mulf %46, %47 : vector<8x384xf32>
    %49 = arith.addf %44, %48 : vector<8x384xf32>
    %c0_48 = arith.constant 0 : index
    %c47 = arith.constant 47 : index
    %50 = vector.load %arg2[%c0_48, %c47] : memref<8x50xf32, #tpu.memory_space<vmem>>, vector<8x1xf32>
    %51 = vector.broadcast %50 : vector<8x1xf32> to vector<8x384xf32>
    %52 = vector.broadcast %21 : vector<1x384xf32> to vector<8x384xf32>
    %53 = arith.mulf %51, %52 : vector<8x384xf32>
    %54 = arith.addf %49, %53 : vector<8x384xf32>
    %c0_49 = arith.constant 0 : index
    %c20_50 = arith.constant 20 : index
    %55 = vector.load %arg2[%c0_49, %c20_50] : memref<8x50xf32, #tpu.memory_space<vmem>>, vector<8x1xf32>
    %56 = vector.broadcast %55 : vector<8x1xf32> to vector<8x384xf32>
    %57 = vector.broadcast %5 : vector<1x384xf32> to vector<8x384xf32>
    %58 = arith.mulf %56, %57 : vector<8x384xf32>
    %59 = arith.addf %54, %58 : vector<8x384xf32>
    %c0_51 = arith.constant 0 : index
    %c45 = arith.constant 45 : index
    %60 = vector.load %arg2[%c0_51, %c45] : memref<8x50xf32, #tpu.memory_space<vmem>>, vector<8x1xf32>
    %61 = vector.broadcast %60 : vector<8x1xf32> to vector<8x384xf32>
    %62 = vector.broadcast %23 : vector<1x384xf32> to vector<8x384xf32>
    %63 = arith.mulf %61, %62 : vector<8x384xf32>
    %64 = arith.addf %59, %63 : vector<8x384xf32>
    %c0_52 = arith.constant 0 : index
    %c14 = arith.constant 14 : index
    %65 = vector.load %arg2[%c0_52, %c14] : memref<8x50xf32, #tpu.memory_space<vmem>>, vector<8x1xf32>
    %66 = vector.broadcast %65 : vector<8x1xf32> to vector<8x384xf32>
    %67 = vector.broadcast %7 : vector<1x384xf32> to vector<8x384xf32>
    %68 = arith.mulf %66, %67 : vector<8x384xf32>
    %69 = arith.addf %64, %68 : vector<8x384xf32>
    %c0_53 = arith.constant 0 : index
    %c39 = arith.constant 39 : index
    %70 = vector.load %arg2[%c0_53, %c39] : memref<8x50xf32, #tpu.memory_space<vmem>>, vector<8x1xf32>
    %71 = vector.broadcast %70 : vector<8x1xf32> to vector<8x384xf32>
    %72 = vector.broadcast %25 : vector<1x384xf32> to vector<8x384xf32>
    %73 = arith.mulf %71, %72 : vector<8x384xf32>
    %74 = arith.addf %69, %73 : vector<8x384xf32>
    %c0_54 = arith.constant 0 : index
    %c12 = arith.constant 12 : index
    %75 = vector.load %arg2[%c0_54, %c12] : memref<8x50xf32, #tpu.memory_space<vmem>>, vector<8x1xf32>
    %76 = vector.broadcast %75 : vector<8x1xf32> to vector<8x384xf32>
    %77 = vector.broadcast %9 : vector<1x384xf32> to vector<8x384xf32>
    %78 = arith.mulf %76, %77 : vector<8x384xf32>
    %79 = arith.addf %74, %78 : vector<8x384xf32>
    %c0_55 = arith.constant 0 : index
    %c37_56 = arith.constant 37 : index
    %80 = vector.load %arg2[%c0_55, %c37_56] : memref<8x50xf32, #tpu.memory_space<vmem>>, vector<8x1xf32>
    %81 = vector.broadcast %80 : vector<8x1xf32> to vector<8x384xf32>
    %82 = vector.broadcast %27 : vector<1x384xf32> to vector<8x384xf32>
    %83 = arith.mulf %81, %82 : vector<8x384xf32>
    %84 = arith.addf %79, %83 : vector<8x384xf32>
    %c0_57 = arith.constant 0 : index
    %c10 = arith.constant 10 : index
    %85 = vector.load %arg2[%c0_57, %c10] : memref<8x50xf32, #tpu.memory_space<vmem>>, vector<8x1xf32>
    %86 = vector.broadcast %85 : vector<8x1xf32> to vector<8x384xf32>
    %87 = vector.broadcast %11 : vector<1x384xf32> to vector<8x384xf32>
    %88 = arith.mulf %86, %87 : vector<8x384xf32>
    %89 = arith.addf %84, %88 : vector<8x384xf32>
    %c0_58 = arith.constant 0 : index
    %c35 = arith.constant 35 : index
    %90 = vector.load %arg2[%c0_58, %c35] : memref<8x50xf32, #tpu.memory_space<vmem>>, vector<8x1xf32>
    %91 = vector.broadcast %90 : vector<8x1xf32> to vector<8x384xf32>
    %92 = vector.broadcast %29 : vector<1x384xf32> to vector<8x384xf32>
    %93 = arith.mulf %91, %92 : vector<8x384xf32>
    %94 = arith.addf %89, %93 : vector<8x384xf32>
    %c0_59 = arith.constant 0 : index
    %c4 = arith.constant 4 : index
    %95 = vector.load %arg2[%c0_59, %c4] : memref<8x50xf32, #tpu.memory_space<vmem>>, vector<8x1xf32>
    %96 = vector.broadcast %95 : vector<8x1xf32> to vector<8x384xf32>
    %97 = vector.broadcast %13 : vector<1x384xf32> to vector<8x384xf32>
    %98 = arith.mulf %96, %97 : vector<8x384xf32>
    %99 = arith.addf %94, %98 : vector<8x384xf32>
    %c0_60 = arith.constant 0 : index
    %c29 = arith.constant 29 : index
    %100 = vector.load %arg2[%c0_60, %c29] : memref<8x50xf32, #tpu.memory_space<vmem>>, vector<8x1xf32>
    %101 = vector.broadcast %100 : vector<8x1xf32> to vector<8x384xf32>
    %102 = vector.broadcast %31 : vector<1x384xf32> to vector<8x384xf32>
    %103 = arith.mulf %101, %102 : vector<8x384xf32>
    %104 = arith.addf %99, %103 : vector<8x384xf32>
    %c0_61 = arith.constant 0 : index
    %c2_62 = arith.constant 2 : index
    %105 = vector.load %arg2[%c0_61, %c2_62] : memref<8x50xf32, #tpu.memory_space<vmem>>, vector<8x1xf32>
    %106 = vector.broadcast %105 : vector<8x1xf32> to vector<8x384xf32>
    %107 = vector.broadcast %15 : vector<1x384xf32> to vector<8x384xf32>
    %108 = arith.mulf %106, %107 : vector<8x384xf32>
    %109 = arith.addf %104, %108 : vector<8x384xf32>
    %c0_63 = arith.constant 0 : index
    %c27 = arith.constant 27 : index
    %110 = vector.load %arg2[%c0_63, %c27] : memref<8x50xf32, #tpu.memory_space<vmem>>, vector<8x1xf32>
    %111 = vector.broadcast %110 : vector<8x1xf32> to vector<8x384xf32>
    %112 = vector.broadcast %33 : vector<1x384xf32> to vector<8x384xf32>
    %113 = arith.mulf %111, %112 : vector<8x384xf32>
    %114 = arith.addf %109, %113 : vector<8x384xf32>
    %c0_64 = arith.constant 0 : index
    %c0_65 = arith.constant 0 : index
    %115 = vector.load %arg2[%c0_64, %c0_65] : memref<8x50xf32, #tpu.memory_space<vmem>>, vector<8x1xf32>
    %116 = vector.broadcast %115 : vector<8x1xf32> to vector<8x384xf32>
    %117 = vector.broadcast %17 : vector<1x384xf32> to vector<8x384xf32>
    %118 = arith.mulf %116, %117 : vector<8x384xf32>
    %119 = arith.addf %114, %118 : vector<8x384xf32>
    %c0_66 = arith.constant 0 : index
    %c25 = arith.constant 25 : index
    %120 = vector.load %arg2[%c0_66, %c25] : memref<8x50xf32, #tpu.memory_space<vmem>>, vector<8x1xf32>
    %121 = vector.broadcast %120 : vector<8x1xf32> to vector<8x384xf32>
    %122 = vector.broadcast %35 : vector<1x384xf32> to vector<8x384xf32>
    %123 = arith.mulf %121, %122 : vector<8x384xf32>
    %124 = arith.addf %119, %123 : vector<8x384xf32>
    %c0_67 = arith.constant 0 : index
    %c0_68 = arith.constant 0 : index
    %125 = vector.load %arg3[%c0_67, %c0_68] : memref<8x1xf32, #tpu.memory_space<vmem>>, vector<8x1xf32>
    %126 = vector.broadcast %125 : vector<8x1xf32> to vector<8x384xf32>
    %127 = arith.addf %124, %126 : vector<8x384xf32>
    %128 = math.tanh %127 : vector<8x384xf32>
    %c0_69 = arith.constant 0 : index
    %c0_70 = arith.constant 0 : index
    %129 = vector.load %arg4[%c0_69, %c0_70] : memref<8x2xf32, #tpu.memory_space<vmem>>, vector<8x1xf32>
    %130 = vector.broadcast %129 : vector<8x1xf32> to vector<8x384xf32>
    %131 = arith.mulf %128, %130 : vector<8x384xf32>
    %cst = arith.constant dense<0.000000e+00> : vector<384xf32>
    %132 = vector.multi_reduction <add>, %131, %cst [0] : vector<8x384xf32> to vector<384xf32>
    %133 = vector.shape_cast %132 : vector<384xf32> to vector<1x384xf32>
    %c0_71 = arith.constant 0 : index
    %134 = memref.load %arg5[%c0_71] : memref<2xf32, #tpu.memory_space<smem>>
    %135 = vector.broadcast %134 : f32 to vector<1x384xf32>
    %136 = arith.addf %133, %135 : vector<1x384xf32>
    %c0_72 = arith.constant 0 : index
    %c0_73 = arith.constant 0 : index
    %c0_74 = arith.constant 0 : index
    %137 = vector.load %arg6[%c0_72, %c0_73, %c0_74] : memref<1x8x384xf32, #tpu.memory_space<vmem>>, vector<1x1x384xf32>
    %138 = vector.shape_cast %137 : vector<1x1x384xf32> to vector<1x384xf32>
    %139 = vector.shape_cast %136 : vector<1x384xf32> to vector<1x1x384xf32>
    tpu.vector_store %arg6[%c0_72, %c0_73, %c0_74], %139 {strides = array<i32>} : memref<1x8x384xf32, #tpu.memory_space<vmem>>, vector<1x1x384xf32>,
    %c0_75 = arith.constant 0 : index
    %c1_76 = arith.constant 1 : index
    %140 = vector.load %arg4[%c0_75, %c1_76] : memref<8x2xf32, #tpu.memory_space<vmem>>, vector<8x1xf32>
    %141 = vector.broadcast %140 : vector<8x1xf32> to vector<8x384xf32>
    %142 = arith.mulf %128, %141 : vector<8x384xf32>
    %cst_77 = arith.constant dense<0.000000e+00> : vector<384xf32>
    %143 = vector.multi_reduction <add>, %142, %cst_77 [0] : vector<8x384xf32> to vector<384xf32>
    %144 = vector.shape_cast %143 : vector<384xf32> to vector<1x384xf32>
    %c1_78 = arith.constant 1 : index
    %145 = memref.load %arg5[%c1_78] : memref<2xf32, #tpu.memory_space<smem>>
    %146 = vector.broadcast %145 : f32 to vector<1x384xf32>
    %147 = arith.addf %144, %146 : vector<1x384xf32>
    %c0_79 = arith.constant 0 : index
    %c1_80 = arith.constant 1 : index
    %c0_81 = arith.constant 0 : index
    %148 = vector.load %arg6[%c0_79, %c1_80, %c0_81] : memref<1x8x384xf32, #tpu.memory_space<vmem>>, vector<1x1x384xf32>
    %149 = vector.shape_cast %148 : vector<1x1x384xf32> to vector<1x384xf32>
    %150 = vector.shape_cast %147 : vector<1x384xf32> to vector<1x1x384xf32>
    tpu.vector_store %arg6[%c0_79, %c1_80, %c0_81], %150 {strides = array<i32>} : memref<1x8x384xf32, #tpu.memory_space<vmem>>, vector<1x1x384xf32>,
    %c0_82 = arith.constant 0 : index
    %c23 = arith.constant 23 : index
    %151 = vector.load %arg2[%c0_82, %c23] : memref<8x50xf32, #tpu.memory_space<vmem>>, vector<8x1xf32>
    %152 = vector.broadcast %151 : vector<8x1xf32> to vector<8x384xf32>
    %153 = vector.broadcast %3 : vector<1x384xf32> to vector<8x384xf32>
    %154 = arith.mulf %152, %153 : vector<8x384xf32>
    %c0_83 = arith.constant 0 : index
    %c48 = arith.constant 48 : index
    %155 = vector.load %arg2[%c0_83, %c48] : memref<8x50xf32, #tpu.memory_space<vmem>>, vector<8x1xf32>
    %156 = vector.broadcast %155 : vector<8x1xf32> to vector<8x384xf32>
    %157 = vector.broadcast %21 : vector<1x384xf32> to vector<8x384xf32>
    %158 = arith.mulf %156, %157 : vector<8x384xf32>
    %159 = arith.addf %154, %158 : vector<8x384xf32>
    %c0_84 = arith.constant 0 : index
    %c21 = arith.constant 21 : index
    %160 = vector.load %arg2[%c0_84, %c21] : memref<8x50xf32, #tpu.memory_space<vmem>>, vector<8x1xf32>
    %161 = vector.broadcast %160 : vector<8x1xf32> to vector<8x384xf32>
    %162 = vector.broadcast %5 : vector<1x384xf32> to vector<8x384xf32>
    %163 = arith.mulf %161, %162 : vector<8x384xf32>
    %164 = arith.addf %159, %163 : vector<8x384xf32>
    %c0_85 = arith.constant 0 : index
    %c46 = arith.constant 46 : index
    %165 = vector.load %arg2[%c0_85, %c46] : memref<8x50xf32, #tpu.memory_space<vmem>>, vector<8x1xf32>
    %166 = vector.broadcast %165 : vector<8x1xf32> to vector<8x384xf32>
    %167 = vector.broadcast %23 : vector<1x384xf32> to vector<8x384xf32>
    %168 = arith.mulf %166, %167 : vector<8x384xf32>
    %169 = arith.addf %164, %168 : vector<8x384xf32>
    %c0_86 = arith.constant 0 : index
    %c13 = arith.constant 13 : index
    %170 = vector.load %arg2[%c0_86, %c13] : memref<8x50xf32, #tpu.memory_space<vmem>>, vector<8x1xf32>
    %171 = vector.broadcast %170 : vector<8x1xf32> to vector<8x384xf32>
    %172 = vector.broadcast %9 : vector<1x384xf32> to vector<8x384xf32>
    %173 = arith.mulf %171, %172 : vector<8x384xf32>
    %174 = arith.addf %169, %173 : vector<8x384xf32>
    %c0_87 = arith.constant 0 : index
    %c38_88 = arith.constant 38 : index
    %175 = vector.load %arg2[%c0_87, %c38_88] : memref<8x50xf32, #tpu.memory_space<vmem>>, vector<8x1xf32>
    %176 = vector.broadcast %175 : vector<8x1xf32> to vector<8x384xf32>
    %177 = vector.broadcast %27 : vector<1x384xf32> to vector<8x384xf32>
    %178 = arith.mulf %176, %177 : vector<8x384xf32>
    %179 = arith.addf %174, %178 : vector<8x384xf32>
    %c0_89 = arith.constant 0 : index
    %c11 = arith.constant 11 : index
    %180 = vector.load %arg2[%c0_89, %c11] : memref<8x50xf32, #tpu.memory_space<vmem>>, vector<8x1xf32>
    %181 = vector.broadcast %180 : vector<8x1xf32> to vector<8x384xf32>
    %182 = vector.broadcast %11 : vector<1x384xf32> to vector<8x384xf32>
    %183 = arith.mulf %181, %182 : vector<8x384xf32>
    %184 = arith.addf %179, %183 : vector<8x384xf32>
    %c0_90 = arith.constant 0 : index
    %c36_91 = arith.constant 36 : index
    %185 = vector.load %arg2[%c0_90, %c36_91] : memref<8x50xf32, #tpu.memory_space<vmem>>, vector<8x1xf32>
    %186 = vector.broadcast %185 : vector<8x1xf32> to vector<8x384xf32>
    %187 = vector.broadcast %29 : vector<1x384xf32> to vector<8x384xf32>
    %188 = arith.mulf %186, %187 : vector<8x384xf32>
    %189 = arith.addf %184, %188 : vector<8x384xf32>
    %c0_92 = arith.constant 0 : index
    %c3 = arith.constant 3 : index
    %190 = vector.load %arg2[%c0_92, %c3] : memref<8x50xf32, #tpu.memory_space<vmem>>, vector<8x1xf32>
    %191 = vector.broadcast %190 : vector<8x1xf32> to vector<8x384xf32>
    %192 = vector.broadcast %15 : vector<1x384xf32> to vector<8x384xf32>
    %193 = arith.mulf %191, %192 : vector<8x384xf32>
    %194 = arith.addf %189, %193 : vector<8x384xf32>
    %c0_93 = arith.constant 0 : index
    %c28 = arith.constant 28 : index
    %195 = vector.load %arg2[%c0_93, %c28] : memref<8x50xf32, #tpu.memory_space<vmem>>, vector<8x1xf32>
    %196 = vector.broadcast %195 : vector<8x1xf32> to vector<8x384xf32>
    %197 = vector.broadcast %33 : vector<1x384xf32> to vector<8x384xf32>
    %198 = arith.mulf %196, %197 : vector<8x384xf32>
    %199 = arith.addf %194, %198 : vector<8x384xf32>
    %c0_94 = arith.constant 0 : index
    %c1_95 = arith.constant 1 : index
    %200 = vector.load %arg2[%c0_94, %c1_95] : memref<8x50xf32, #tpu.memory_space<vmem>>, vector<8x1xf32>
    %201 = vector.broadcast %200 : vector<8x1xf32> to vector<8x384xf32>
    %202 = vector.broadcast %17 : vector<1x384xf32> to vector<8x384xf32>
    %203 = arith.mulf %201, %202 : vector<8x384xf32>
    %204 = arith.addf %199, %203 : vector<8x384xf32>
    %c0_96 = arith.constant 0 : index
    %c26 = arith.constant 26 : index
    %205 = vector.load %arg2[%c0_96, %c26] : memref<8x50xf32, #tpu.memory_space<vmem>>, vector<8x1xf32>
    %206 = vector.broadcast %205 : vector<8x1xf32> to vector<8x384xf32>
    %207 = vector.broadcast %35 : vector<1x384xf32> to vector<8x384xf32>
    %208 = arith.mulf %206, %207 : vector<8x384xf32>
    %209 = arith.addf %204, %208 : vector<8x384xf32>
    %c0_97 = arith.constant 0 : index
    %c0_98 = arith.constant 0 : index
    %210 = vector.load %arg3[%c0_97, %c0_98] : memref<8x1xf32, #tpu.memory_space<vmem>>, vector<8x1xf32>
    %211 = vector.broadcast %210 : vector<8x1xf32> to vector<8x384xf32>
    %212 = arith.addf %209, %211 : vector<8x384xf32>
    %213 = math.tanh %212 : vector<8x384xf32>
    %c0_99 = arith.constant 0 : index
    %c0_100 = arith.constant 0 : index
    %214 = vector.load %arg4[%c0_99, %c0_100] : memref<8x2xf32, #tpu.memory_space<vmem>>, vector<8x1xf32>
    %215 = vector.broadcast %214 : vector<8x1xf32> to vector<8x384xf32>
    %216 = arith.mulf %213, %215 : vector<8x384xf32>
    %cst_101 = arith.constant dense<0.000000e+00> : vector<384xf32>
    %217 = vector.multi_reduction <add>, %216, %cst_101 [0] : vector<8x384xf32> to vector<384xf32>
    %218 = vector.shape_cast %217 : vector<384xf32> to vector<1x384xf32>
    %c0_102 = arith.constant 0 : index
    %219 = memref.load %arg5[%c0_102] : memref<2xf32, #tpu.memory_space<smem>>
    %220 = vector.broadcast %219 : f32 to vector<1x384xf32>
    %221 = arith.addf %218, %220 : vector<1x384xf32>
    %c0_103 = arith.constant 0 : index
    %c2_104 = arith.constant 2 : index
    %c0_105 = arith.constant 0 : index
    %222 = vector.load %arg6[%c0_103, %c2_104, %c0_105] : memref<1x8x384xf32, #tpu.memory_space<vmem>>, vector<1x1x384xf32>
    %223 = vector.shape_cast %222 : vector<1x1x384xf32> to vector<1x384xf32>
    %224 = vector.shape_cast %221 : vector<1x384xf32> to vector<1x1x384xf32>
    tpu.vector_store %arg6[%c0_103, %c2_104, %c0_105], %224 {strides = array<i32>} : memref<1x8x384xf32, #tpu.memory_space<vmem>>, vector<1x1x384xf32>,
    %c0_106 = arith.constant 0 : index
    %c1_107 = arith.constant 1 : index
    %225 = vector.load %arg4[%c0_106, %c1_107] : memref<8x2xf32, #tpu.memory_space<vmem>>, vector<8x1xf32>
    %226 = vector.broadcast %225 : vector<8x1xf32> to vector<8x384xf32>
    %227 = arith.mulf %213, %226 : vector<8x384xf32>
    %cst_108 = arith.constant dense<0.000000e+00> : vector<384xf32>
    %228 = vector.multi_reduction <add>, %227, %cst_108 [0] : vector<8x384xf32> to vector<384xf32>
    %229 = vector.shape_cast %228 : vector<384xf32> to vector<1x384xf32>
    %c1_109 = arith.constant 1 : index
    %230 = memref.load %arg5[%c1_109] : memref<2xf32, #tpu.memory_space<smem>>
    %231 = vector.broadcast %230 : f32 to vector<1x384xf32>
    %232 = arith.addf %229, %231 : vector<1x384xf32>
    %c0_110 = arith.constant 0 : index
    %c3_111 = arith.constant 3 : index
    %c0_112 = arith.constant 0 : index
    %233 = vector.load %arg6[%c0_110, %c3_111, %c0_112] : memref<1x8x384xf32, #tpu.memory_space<vmem>>, vector<1x1x384xf32>
    %234 = vector.shape_cast %233 : vector<1x1x384xf32> to vector<1x384xf32>
    %235 = vector.shape_cast %232 : vector<1x384xf32> to vector<1x1x384xf32>
    tpu.vector_store %arg6[%c0_110, %c3_111, %c0_112], %235 {strides = array<i32>} : memref<1x8x384xf32, #tpu.memory_space<vmem>>, vector<1x1x384xf32>,
    %c0_113 = arith.constant 0 : index
    %c19_114 = arith.constant 19 : index
    %236 = vector.load %arg2[%c0_113, %c19_114] : memref<8x50xf32, #tpu.memory_space<vmem>>, vector<8x1xf32>
    %237 = vector.broadcast %236 : vector<8x1xf32> to vector<8x384xf32>
    %238 = vector.broadcast %7 : vector<1x384xf32> to vector<8x384xf32>
    %239 = arith.mulf %237, %238 : vector<8x384xf32>
    %c0_115 = arith.constant 0 : index
    %c44 = arith.constant 44 : index
    %240 = vector.load %arg2[%c0_115, %c44] : memref<8x50xf32, #tpu.memory_space<vmem>>, vector<8x1xf32>
    %241 = vector.broadcast %240 : vector<8x1xf32> to vector<8x384xf32>
    %242 = vector.broadcast %25 : vector<1x384xf32> to vector<8x384xf32>
    %243 = arith.mulf %241, %242 : vector<8x384xf32>
    %244 = arith.addf %239, %243 : vector<8x384xf32>
    %c0_116 = arith.constant 0 : index
    %c17 = arith.constant 17 : index
    %245 = vector.load %arg2[%c0_116, %c17] : memref<8x50xf32, #tpu.memory_space<vmem>>, vector<8x1xf32>
    %246 = vector.broadcast %245 : vector<8x1xf32> to vector<8x384xf32>
    %247 = vector.broadcast %9 : vector<1x384xf32> to vector<8x384xf32>
    %248 = arith.mulf %246, %247 : vector<8x384xf32>
    %249 = arith.addf %244, %248 : vector<8x384xf32>
    %c0_117 = arith.constant 0 : index
    %c42 = arith.constant 42 : index
    %250 = vector.load %arg2[%c0_117, %c42] : memref<8x50xf32, #tpu.memory_space<vmem>>, vector<8x1xf32>
    %251 = vector.broadcast %250 : vector<8x1xf32> to vector<8x384xf32>
    %252 = vector.broadcast %27 : vector<1x384xf32> to vector<8x384xf32>
    %253 = arith.mulf %251, %252 : vector<8x384xf32>
    %254 = arith.addf %249, %253 : vector<8x384xf32>
    %c0_118 = arith.constant 0 : index
    %c15 = arith.constant 15 : index
    %255 = vector.load %arg2[%c0_118, %c15] : memref<8x50xf32, #tpu.memory_space<vmem>>, vector<8x1xf32>
    %256 = vector.broadcast %255 : vector<8x1xf32> to vector<8x384xf32>
    %257 = vector.broadcast %11 : vector<1x384xf32> to vector<8x384xf32>
    %258 = arith.mulf %256, %257 : vector<8x384xf32>
    %259 = arith.addf %254, %258 : vector<8x384xf32>
    %c0_119 = arith.constant 0 : index
    %c40 = arith.constant 40 : index
    %260 = vector.load %arg2[%c0_119, %c40] : memref<8x50xf32, #tpu.memory_space<vmem>>, vector<8x1xf32>
    %261 = vector.broadcast %260 : vector<8x1xf32> to vector<8x384xf32>
    %262 = vector.broadcast %29 : vector<1x384xf32> to vector<8x384xf32>
    %263 = arith.mulf %261, %262 : vector<8x384xf32>
    %264 = arith.addf %259, %263 : vector<8x384xf32>
    %c0_120 = arith.constant 0 : index
    %c9 = arith.constant 9 : index
    %265 = vector.load %arg2[%c0_120, %c9] : memref<8x50xf32, #tpu.memory_space<vmem>>, vector<8x1xf32>
    %266 = vector.broadcast %265 : vector<8x1xf32> to vector<8x384xf32>
    %267 = vector.broadcast %13 : vector<1x384xf32> to vector<8x384xf32>
    %268 = arith.mulf %266, %267 : vector<8x384xf32>
    %269 = arith.addf %264, %268 : vector<8x384xf32>
    %c0_121 = arith.constant 0 : index
    %c34 = arith.constant 34 : index
    %270 = vector.load %arg2[%c0_121, %c34] : memref<8x50xf32, #tpu.memory_space<vmem>>, vector<8x1xf32>
    %271 = vector.broadcast %270 : vector<8x1xf32> to vector<8x384xf32>
    %272 = vector.broadcast %31 : vector<1x384xf32> to vector<8x384xf32>
    %273 = arith.mulf %271, %272 : vector<8x384xf32>
    %274 = arith.addf %269, %273 : vector<8x384xf32>
    %c0_122 = arith.constant 0 : index
    %c7 = arith.constant 7 : index
    %275 = vector.load %arg2[%c0_122, %c7] : memref<8x50xf32, #tpu.memory_space<vmem>>, vector<8x1xf32>
    %276 = vector.broadcast %275 : vector<8x1xf32> to vector<8x384xf32>
    %277 = vector.broadcast %15 : vector<1x384xf32> to vector<8x384xf32>
    %278 = arith.mulf %276, %277 : vector<8x384xf32>
    %279 = arith.addf %274, %278 : vector<8x384xf32>
    %c0_123 = arith.constant 0 : index
    %c32 = arith.constant 32 : index
    %280 = vector.load %arg2[%c0_123, %c32] : memref<8x50xf32, #tpu.memory_space<vmem>>, vector<8x1xf32>
    %281 = vector.broadcast %280 : vector<8x1xf32> to vector<8x384xf32>
    %282 = vector.broadcast %33 : vector<1x384xf32> to vector<8x384xf32>
    %283 = arith.mulf %281, %282 : vector<8x384xf32>
    %284 = arith.addf %279, %283 : vector<8x384xf32>
    %c0_124 = arith.constant 0 : index
    %c5 = arith.constant 5 : index
    %285 = vector.load %arg2[%c0_124, %c5] : memref<8x50xf32, #tpu.memory_space<vmem>>, vector<8x1xf32>
    %286 = vector.broadcast %285 : vector<8x1xf32> to vector<8x384xf32>
    %287 = vector.broadcast %17 : vector<1x384xf32> to vector<8x384xf32>
    %288 = arith.mulf %286, %287 : vector<8x384xf32>
    %289 = arith.addf %284, %288 : vector<8x384xf32>
    %c0_125 = arith.constant 0 : index
    %c30 = arith.constant 30 : index
    %290 = vector.load %arg2[%c0_125, %c30] : memref<8x50xf32, #tpu.memory_space<vmem>>, vector<8x1xf32>
    %291 = vector.broadcast %290 : vector<8x1xf32> to vector<8x384xf32>
    %292 = vector.broadcast %35 : vector<1x384xf32> to vector<8x384xf32>
    %293 = arith.mulf %291, %292 : vector<8x384xf32>
    %294 = arith.addf %289, %293 : vector<8x384xf32>
    %c0_126 = arith.constant 0 : index
    %c0_127 = arith.constant 0 : index
    %295 = vector.load %arg3[%c0_126, %c0_127] : memref<8x1xf32, #tpu.memory_space<vmem>>, vector<8x1xf32>
    %296 = vector.broadcast %295 : vector<8x1xf32> to vector<8x384xf32>
    %297 = arith.addf %294, %296 : vector<8x384xf32>
    %298 = math.tanh %297 : vector<8x384xf32>
    %c0_128 = arith.constant 0 : index
    %c0_129 = arith.constant 0 : index
    %299 = vector.load %arg4[%c0_128, %c0_129] : memref<8x2xf32, #tpu.memory_space<vmem>>, vector<8x1xf32>
    %300 = vector.broadcast %299 : vector<8x1xf32> to vector<8x384xf32>
    %301 = arith.mulf %298, %300 : vector<8x384xf32>
    %cst_130 = arith.constant dense<0.000000e+00> : vector<384xf32>
    %302 = vector.multi_reduction <add>, %301, %cst_130 [0] : vector<8x384xf32> to vector<384xf32>
    %303 = vector.shape_cast %302 : vector<384xf32> to vector<1x384xf32>
    %c0_131 = arith.constant 0 : index
    %304 = memref.load %arg5[%c0_131] : memref<2xf32, #tpu.memory_space<smem>>
    %305 = vector.broadcast %304 : f32 to vector<1x384xf32>
    %306 = arith.addf %303, %305 : vector<1x384xf32>
    %c0_132 = arith.constant 0 : index
    %c4_133 = arith.constant 4 : index
    %c0_134 = arith.constant 0 : index
    %307 = vector.load %arg6[%c0_132, %c4_133, %c0_134] : memref<1x8x384xf32, #tpu.memory_space<vmem>>, vector<1x1x384xf32>
    %308 = vector.shape_cast %307 : vector<1x1x384xf32> to vector<1x384xf32>
    %309 = vector.shape_cast %306 : vector<1x384xf32> to vector<1x1x384xf32>
    tpu.vector_store %arg6[%c0_132, %c4_133, %c0_134], %309 {strides = array<i32>} : memref<1x8x384xf32, #tpu.memory_space<vmem>>, vector<1x1x384xf32>,
    %c0_135 = arith.constant 0 : index
    %c1_136 = arith.constant 1 : index
    %310 = vector.load %arg4[%c0_135, %c1_136] : memref<8x2xf32, #tpu.memory_space<vmem>>, vector<8x1xf32>
    %311 = vector.broadcast %310 : vector<8x1xf32> to vector<8x384xf32>
    %312 = arith.mulf %298, %311 : vector<8x384xf32>
    %cst_137 = arith.constant dense<0.000000e+00> : vector<384xf32>
    %313 = vector.multi_reduction <add>, %312, %cst_137 [0] : vector<8x384xf32> to vector<384xf32>
    %314 = vector.shape_cast %313 : vector<384xf32> to vector<1x384xf32>
    %c1_138 = arith.constant 1 : index
    %315 = memref.load %arg5[%c1_138] : memref<2xf32, #tpu.memory_space<smem>>
    %316 = vector.broadcast %315 : f32 to vector<1x384xf32>
    %317 = arith.addf %314, %316 : vector<1x384xf32>
    %c0_139 = arith.constant 0 : index
    %c5_140 = arith.constant 5 : index
    %c0_141 = arith.constant 0 : index
    %318 = vector.load %arg6[%c0_139, %c5_140, %c0_141] : memref<1x8x384xf32, #tpu.memory_space<vmem>>, vector<1x1x384xf32>
    %319 = vector.shape_cast %318 : vector<1x1x384xf32> to vector<1x384xf32>
    %320 = vector.shape_cast %317 : vector<1x384xf32> to vector<1x1x384xf32>
    tpu.vector_store %arg6[%c0_139, %c5_140, %c0_141], %320 {strides = array<i32>} : memref<1x8x384xf32, #tpu.memory_space<vmem>>, vector<1x1x384xf32>,
    %c0_142 = arith.constant 0 : index
    %c18_143 = arith.constant 18 : index
    %321 = vector.load %arg2[%c0_142, %c18_143] : memref<8x50xf32, #tpu.memory_space<vmem>>, vector<8x1xf32>
    %322 = vector.broadcast %321 : vector<8x1xf32> to vector<8x384xf32>
    %323 = vector.broadcast %9 : vector<1x384xf32> to vector<8x384xf32>
    %324 = arith.mulf %322, %323 : vector<8x384xf32>
    %c0_144 = arith.constant 0 : index
    %c43 = arith.constant 43 : index
    %325 = vector.load %arg2[%c0_144, %c43] : memref<8x50xf32, #tpu.memory_space<vmem>>, vector<8x1xf32>
    %326 = vector.broadcast %325 : vector<8x1xf32> to vector<8x384xf32>
    %327 = vector.broadcast %27 : vector<1x384xf32> to vector<8x384xf32>
    %328 = arith.mulf %326, %327 : vector<8x384xf32>
    %329 = arith.addf %324, %328 : vector<8x384xf32>
    %c0_145 = arith.constant 0 : index
    %c16 = arith.constant 16 : index
    %330 = vector.load %arg2[%c0_145, %c16] : memref<8x50xf32, #tpu.memory_space<vmem>>, vector<8x1xf32>
    %331 = vector.broadcast %330 : vector<8x1xf32> to vector<8x384xf32>
    %332 = vector.broadcast %11 : vector<1x384xf32> to vector<8x384xf32>
    %333 = arith.mulf %331, %332 : vector<8x384xf32>
    %334 = arith.addf %329, %333 : vector<8x384xf32>
    %c0_146 = arith.constant 0 : index
    %c41 = arith.constant 41 : index
    %335 = vector.load %arg2[%c0_146, %c41] : memref<8x50xf32, #tpu.memory_space<vmem>>, vector<8x1xf32>
    %336 = vector.broadcast %335 : vector<8x1xf32> to vector<8x384xf32>
    %337 = vector.broadcast %29 : vector<1x384xf32> to vector<8x384xf32>
    %338 = arith.mulf %336, %337 : vector<8x384xf32>
    %339 = arith.addf %334, %338 : vector<8x384xf32>
    %c0_147 = arith.constant 0 : index
    %c8 = arith.constant 8 : index
    %340 = vector.load %arg2[%c0_147, %c8] : memref<8x50xf32, #tpu.memory_space<vmem>>, vector<8x1xf32>
    %341 = vector.broadcast %340 : vector<8x1xf32> to vector<8x384xf32>
    %342 = vector.broadcast %15 : vector<1x384xf32> to vector<8x384xf32>
    %343 = arith.mulf %341, %342 : vector<8x384xf32>
    %344 = arith.addf %339, %343 : vector<8x384xf32>
    %c0_148 = arith.constant 0 : index
    %c33 = arith.constant 33 : index
    %345 = vector.load %arg2[%c0_148, %c33] : memref<8x50xf32, #tpu.memory_space<vmem>>, vector<8x1xf32>
    %346 = vector.broadcast %345 : vector<8x1xf32> to vector<8x384xf32>
    %347 = vector.broadcast %33 : vector<1x384xf32> to vector<8x384xf32>
    %348 = arith.mulf %346, %347 : vector<8x384xf32>
    %349 = arith.addf %344, %348 : vector<8x384xf32>
    %c0_149 = arith.constant 0 : index
    %c6 = arith.constant 6 : index
    %350 = vector.load %arg2[%c0_149, %c6] : memref<8x50xf32, #tpu.memory_space<vmem>>, vector<8x1xf32>
    %351 = vector.broadcast %350 : vector<8x1xf32> to vector<8x384xf32>
    %352 = vector.broadcast %17 : vector<1x384xf32> to vector<8x384xf32>
    %353 = arith.mulf %351, %352 : vector<8x384xf32>
    %354 = arith.addf %349, %353 : vector<8x384xf32>
    %c0_150 = arith.constant 0 : index
    %c31 = arith.constant 31 : index
    %355 = vector.load %arg2[%c0_150, %c31] : memref<8x50xf32, #tpu.memory_space<vmem>>, vector<8x1xf32>
    %356 = vector.broadcast %355 : vector<8x1xf32> to vector<8x384xf32>
    %357 = vector.broadcast %35 : vector<1x384xf32> to vector<8x384xf32>
    %358 = arith.mulf %356, %357 : vector<8x384xf32>
    %359 = arith.addf %354, %358 : vector<8x384xf32>
    %c0_151 = arith.constant 0 : index
    %c0_152 = arith.constant 0 : index
    %360 = vector.load %arg3[%c0_151, %c0_152] : memref<8x1xf32, #tpu.memory_space<vmem>>, vector<8x1xf32>
    %361 = vector.broadcast %360 : vector<8x1xf32> to vector<8x384xf32>
    %362 = arith.addf %359, %361 : vector<8x384xf32>
    %363 = math.tanh %362 : vector<8x384xf32>
    %c0_153 = arith.constant 0 : index
    %c0_154 = arith.constant 0 : index
    %364 = vector.load %arg4[%c0_153, %c0_154] : memref<8x2xf32, #tpu.memory_space<vmem>>, vector<8x1xf32>
    %365 = vector.broadcast %364 : vector<8x1xf32> to vector<8x384xf32>
    %366 = arith.mulf %363, %365 : vector<8x384xf32>
    %cst_155 = arith.constant dense<0.000000e+00> : vector<384xf32>
    %367 = vector.multi_reduction <add>, %366, %cst_155 [0] : vector<8x384xf32> to vector<384xf32>
    %368 = vector.shape_cast %367 : vector<384xf32> to vector<1x384xf32>
    %c0_156 = arith.constant 0 : index
    %369 = memref.load %arg5[%c0_156] : memref<2xf32, #tpu.memory_space<smem>>
    %370 = vector.broadcast %369 : f32 to vector<1x384xf32>
    %371 = arith.addf %368, %370 : vector<1x384xf32>
    %c0_157 = arith.constant 0 : index
    %c6_158 = arith.constant 6 : index
    %c0_159 = arith.constant 0 : index
    %372 = vector.load %arg6[%c0_157, %c6_158, %c0_159] : memref<1x8x384xf32, #tpu.memory_space<vmem>>, vector<1x1x384xf32>
    %373 = vector.shape_cast %372 : vector<1x1x384xf32> to vector<1x384xf32>
    %374 = vector.shape_cast %371 : vector<1x384xf32> to vector<1x1x384xf32>
    tpu.vector_store %arg6[%c0_157, %c6_158, %c0_159], %374 {strides = array<i32>} : memref<1x8x384xf32, #tpu.memory_space<vmem>>, vector<1x1x384xf32>,
    %c0_160 = arith.constant 0 : index
    %c1_161 = arith.constant 1 : index
    %375 = vector.load %arg4[%c0_160, %c1_161] : memref<8x2xf32, #tpu.memory_space<vmem>>, vector<8x1xf32>
    %376 = vector.broadcast %375 : vector<8x1xf32> to vector<8x384xf32>
    %377 = arith.mulf %363, %376 : vector<8x384xf32>
    %cst_162 = arith.constant dense<0.000000e+00> : vector<384xf32>
    %378 = vector.multi_reduction <add>, %377, %cst_162 [0] : vector<8x384xf32> to vector<384xf32>
    %379 = vector.shape_cast %378 : vector<384xf32> to vector<1x384xf32>
    %c1_163 = arith.constant 1 : index
    %380 = memref.load %arg5[%c1_163] : memref<2xf32, #tpu.memory_space<smem>>
    %381 = vector.broadcast %380 : f32 to vector<1x384xf32>
    %382 = arith.addf %379, %381 : vector<1x384xf32>
    %c0_164 = arith.constant 0 : index
    %c7_165 = arith.constant 7 : index
    %c0_166 = arith.constant 0 : index
    %383 = vector.load %arg6[%c0_164, %c7_165, %c0_166] : memref<1x8x384xf32, #tpu.memory_space<vmem>>, vector<1x1x384xf32>
    %384 = vector.shape_cast %383 : vector<1x1x384xf32> to vector<1x384xf32>
    %385 = vector.shape_cast %382 : vector<1x384xf32> to vector<1x1x384xf32>
    tpu.vector_store %arg6[%c0_164, %c7_165, %c0_166], %385 {strides = array<i32>} : memref<1x8x384xf32, #tpu.memory_space<vmem>>, vector<1x1x384xf32>,
    return
  }
  func.func @transform_0(%arg0: i32) -> (i32, i32, i32) {
    %c0_i32 = arith.constant 0 : i32
    %c0_i32_0 = arith.constant 0 : i32
    %c0_i32_1 = arith.constant 0 : i32
    return %arg0, %c0_i32, %c0_i32_0 : i32, i32, i32
  }
  func.func @transform_1(%arg0: i32) -> (i32, i32) {
    %c0_i32 = arith.constant 0 : i32
    %c0_i32_0 = arith.constant 0 : i32
    %c0_i32_1 = arith.constant 0 : i32
    return %c0_i32, %c0_i32_0 : i32, i32
  }
  func.func @transform_2(%arg0: i32) -> (i32, i32) {
    %c0_i32 = arith.constant 0 : i32
    %c0_i32_0 = arith.constant 0 : i32
    %c0_i32_1 = arith.constant 0 : i32
    return %c0_i32, %c0_i32_0 : i32, i32
  }
  func.func @transform_3(%arg0: i32) -> (i32, i32) {
    %c0_i32 = arith.constant 0 : i32
    %c0_i32_0 = arith.constant 0 : i32
    %c0_i32_1 = arith.constant 0 : i32
    return %c0_i32, %c0_i32_0 : i32, i32
  }
  func.func @transform_4(%arg0: i32) -> i32 {
    %c0_i32 = arith.constant 0 : i32
    %c0_i32_0 = arith.constant 0 : i32
    return %c0_i32 : i32
  }
  func.func @transform_5(%arg0: i32) -> (i32, i32, i32) {
    %c0_i32 = arith.constant 0 : i32
    %c0_i32_0 = arith.constant 0 : i32
    %c0_i32_1 = arith.constant 0 : i32
    return %arg0, %c0_i32, %c0_i32_0 : i32, i32, i32
  }
}

</mosaic_0001>

<llo_original>
// kernel: upscaler_burgers.1
$region0: #{upscaler_burgers.1}
  #allocation0 [shape = 'u32[]', space=smem, size = 0x4, offset = 0x4, fixed_abs, tag = 'smem constant byte address 0x4 - core index']
  #allocation1 [shape = 'u32[144,128]{1,0:T(1,128)}', space=vmem, size = 0x12000, scoped, tag = 'internal scratch']
  %s0 = inlined_call_operand.vmem [shape: f32[2,2,512], index: 0, kind: input, shape index: {}]
  %s1 = inlined_call_operand.vmem [shape: f32[8,50], index: 1, kind: input, shape index: {}]
  %s2 = inlined_call_operand.vmem [shape: f32[8,1], index: 2, kind: input, shape index: {}]
  %s3 = inlined_call_operand.vmem [shape: f32[8,2], index: 3, kind: input, shape index: {}]
  %s4 = inlined_call_operand.vmem [shape: f32[2], index: 4, kind: input, shape index: {}]
  %s5 = inlined_call_operand.vmem [shape: f32[2,8,384], index: 5, kind: output, shape index: {}]
  %s6 = sld [smem:[#allocation0]]
  $region57: #{upscaler_burgers.1} parent=0
    _
  %s8 = ssub.s32 1, %s6
  %s9 = scalar_select 0, %s8, %s6
  $region1: #{upscaler_burgers.1} parent=0
    #allocation2 [shape = 'u8[512]{0}', space=smem, size = 0x200, scoped, tag = 'input window, operand 4, single buffered']
    #allocation3 [shape = 's32[2]{0}', space=sflag, size = 0x8, scoped, tag = 'scoped memory for upscaler_burgers.1']
    %10 = vsyncpa [#allocation3], 0
    loop: start=0, step=1, limit=4
    $region2: #{upscaler_burgers.1} parent=1 // loop_pre_header
      _
    $region3: #{upscaler_burgers.1} parent=1 // loop_header
      %s12 = sphi 0, %s16
      %p13 = scmp.ge.s32.totalorder %s12, 4
      %s22 = sphi 0, %s24
      %s25 = sphi 0, %s22
      %s26 = sphi 0, %s25
      %s42 = sphi 0, %s26
      %s46 = sphi 0, %s46
      %s48 = sphi 0, %s46
      %s49 = sphi 0, %s48
      %s63 = sphi 0, %s49
      %s67 = sphi 0, %s67
      %s69 = sphi 0, %s67
      %s70 = sphi 0, %s69
      %s84 = sphi 0, %s70
      %s88 = sphi 0, %s88
      %s90 = sphi 0, %s88
      %s91 = sphi 0, %s90
      %s105 = sphi 0, %s91
      %s109 = sphi 0, %s109
      %s111 = sphi 0, %s109
      %s112 = sphi 0, %s111
      %s126 = sphi 0, %s112
      %s132 = sphi 0, %s134
      %s135 = sphi 0, %s132
      %s136 = sphi 0, %s135
      %s152 = sphi 0, %s136
    $region4: #{upscaler_burgers.1} parent=1 // loop_header_branch
      %15 = sbr.rel (%p13) target = $region8
    $region5: #{upscaler_burgers.1} parent=1 // loop_body
      %s17 = ssub.s32 %s12, 1
      %s18 = ssub.s32 %s12, 2
      %s19 = sadd.s32 %s12, 1
      %s20 = ssub.s32 %s12, %s19
      %p21 = scmp.eq.s32.totalorder %s20, 0
      %s23 = sadd.s32 %s22, 1
      %s24 = scalar_select %p21, %s22, %s23
      %p27 = pneg %p21
      %p28 = scmp.eq.s32.totalorder %s12, 1
      %p29 = por %p27, %p28
      %p30 = scmp.ne.s32.totalorder %s22, %s25
      %p31 = scmp.eq.s32.totalorder %s12, 0
      %p32 = por %p30, %p31
      %p33 = scmp.ne.s32.totalorder %s22, %s25
      %p34 = scmp.eq.s32.totalorder %s17, 1
      %p35 = por %p33, %p34
      %p36 = scmp.ne.s32.totalorder %s25, %s26
      %p37 = scmp.eq.s32.totalorder %s17, 0
      %p38 = por %p36, %p37
      %p39 = scmp.ne.s32.totalorder %s25, %s26
      %p40 = scmp.eq.s32.totalorder %s18, 1
      %p41 = por %p39, %p40
      %p43 = scmp.ne.s32.totalorder %s26, %s42
      %p44 = scmp.eq.s32.totalorder %s18, 0
      %p45 = por %p43, %p44
      %s47 = sadd.s32 %s46, 1
      %p50 = scmp.eq.s32.totalorder %s12, 1
      %p51 = scmp.ne.s32.totalorder %s46, %s48
      %p52 = scmp.eq.s32.totalorder %s12, 0
      %p53 = por %p51, %p52
      %p54 = scmp.ne.s32.totalorder %s46, %s48
      %p55 = scmp.eq.s32.totalorder %s17, 1
      %p56 = por %p54, %p55
      %p57 = scmp.ne.s32.totalorder %s48, %s49
      %p58 = scmp.eq.s32.totalorder %s17, 0
      %p59 = por %p57, %p58
      %p60 = scmp.ne.s32.totalorder %s48, %s49
      %p61 = scmp.eq.s32.totalorder %s18, 1
      %p62 = por %p60, %p61
      %p64 = scmp.ne.s32.totalorder %s49, %s63
      %p65 = scmp.eq.s32.totalorder %s18, 0
      %p66 = por %p64, %p65
      %s68 = sadd.s32 %s67, 1
      %p71 = scmp.eq.s32.totalorder %s12, 1
      %p72 = scmp.ne.s32.totalorder %s67, %s69
      %p73 = scmp.eq.s32.totalorder %s12, 0
      %p74 = por %p72, %p73
      %p75 = scmp.ne.s32.totalorder %s67, %s69
      %p76 = scmp.eq.s32.totalorder %s17, 1
      %p77 = por %p75, %p76
      %p78 = scmp.ne.s32.totalorder %s69, %s70
      %p79 = scmp.eq.s32.totalorder %s17, 0
      %p80 = por %p78, %p79
      %p81 = scmp.ne.s32.totalorder %s69, %s70
      %p82 = scmp.eq.s32.totalorder %s18, 1
      %p83 = por %p81, %p82
      %p85 = scmp.ne.s32.totalorder %s70, %s84
      %p86 = scmp.eq.s32.totalorder %s18, 0
      %p87 = por %p85, %p86
      %s89 = sadd.s32 %s88, 1
      %p92 = scmp.eq.s32.totalorder %s12, 1
      %p93 = scmp.ne.s32.totalorder %s88, %s90
      %p94 = scmp.eq.s32.totalorder %s12, 0
      %p95 = por %p93, %p94
      %p96 = scmp.ne.s32.totalorder %s88, %s90
      %p97 = scmp.eq.s32.totalorder %s17, 1
      %p98 = por %p96, %p97
      %p99 = scmp.ne.s32.totalorder %s90, %s91
      %p100 = scmp.eq.s32.totalorder %s17, 0
      %p101 = por %p99, %p100
      %p102 = scmp.ne.s32.totalorder %s90, %s91
      %p103 = scmp.eq.s32.totalorder %s18, 1
      %p104 = por %p102, %p103
      %p106 = scmp.ne.s32.totalorder %s91, %s105
      %p107 = scmp.eq.s32.totalorder %s18, 0
      %p108 = por %p106, %p107
      %s110 = sadd.s32 %s109, 1
      %p113 = scmp.eq.s32.totalorder %s12, 1
      %p114 = scmp.ne.s32.totalorder %s109, %s111
      %p115 = scmp.eq.s32.totalorder %s12, 0
      %p116 = por %p114, %p115
      %p117 = scmp.ne.s32.totalorder %s109, %s111
      %p118 = scmp.eq.s32.totalorder %s17, 1
      %p119 = por %p117, %p118
      %p120 = scmp.ne.s32.totalorder %s111, %s112
      %p121 = scmp.eq.s32.totalorder %s17, 0
      %p122 = por %p120, %p121
      %p123 = scmp.ne.s32.totalorder %s111, %s112
      %p124 = scmp.eq.s32.totalorder %s18, 1
      %p125 = por %p123, %p124
      %p127 = scmp.ne.s32.totalorder %s112, %s126
      %p128 = scmp.eq.s32.totalorder %s18, 0
      %p129 = por %p127, %p128
      %s130 = ssub.s32 %s12, %s19
      %p131 = scmp.eq.s32.totalorder %s130, 0
      %s133 = sadd.s32 %s132, 1
      %s134 = scalar_select %p131, %s132, %s133
      %p137 = pneg %p131
      %p138 = scmp.eq.s32.totalorder %s12, 1
      %p139 = por %p137, %p138
      %p140 = scmp.ne.s32.totalorder %s132, %s135
      %p141 = scmp.eq.s32.totalorder %s12, 0
      %p142 = por %p140, %p141
      %p143 = scmp.ne.s32.totalorder %s132, %s135
      %p144 = scmp.eq.s32.totalorder %s17, 1
      %p145 = por %p143, %p144
      %p146 = scmp.ne.s32.totalorder %s135, %s136
      %p147 = scmp.eq.s32.totalorder %s17, 0
      %p148 = por %p146, %p147
      %p149 = scmp.ne.s32.totalorder %s135, %s136
      %p150 = scmp.eq.s32.totalorder %s18, 1
      %p151 = por %p149, %p150
      %p153 = scmp.ne.s32.totalorder %s136, %s152
      %p154 = scmp.eq.s32.totalorder %s18, 0
      %p155 = por %p153, %p154
      %p156 = scmp.le.s32.totalorder 1, %s12
      %p157 = scmp.lt.s32.totalorder %s12, 3
      %p158 = pnand %p156, %p157
      %p159 = pneg %p158
      // Predicated region
      $region9: #{upscaler_burgers.1} parent=5 // pred_check
        _
      $region10: #{upscaler_burgers.1} parent=5 // pred_check_branch
        %161 = sbr.rel (%p158) target = $region12
      $region11: #{upscaler_burgers.1} parent=5 // pred_region
        %s162 = ssub.s32 %s12, 1
        // Predicated region
        $region13: #{upscaler_burgers.1} parent=11 // pred_check
          %p163 = pneg %p59
        $region14: #{upscaler_burgers.1} parent=11 // pred_check_branch
          %165 = sbr.rel (%p163) target = $region16
        $region15: #{upscaler_burgers.1} parent=11 // pred_region
          _
        $region16: #{upscaler_burgers.1} parent=11 // pred_fallthru
          _
        // Predicated region
        $region17: #{upscaler_burgers.1} parent=11 // pred_check
          %p166 = pneg %p80
        $region18: #{upscaler_burgers.1} parent=11 // pred_check_branch
          %168 = sbr.rel (%p166) target = $region20
        $region19: #{upscaler_burgers.1} parent=11 // pred_region
          _
        $region20: #{upscaler_burgers.1} parent=11 // pred_fallthru
          _
        // Predicated region
        $region21: #{upscaler_burgers.1} parent=11 // pred_check
          %p169 = pneg %p101
        $region22: #{upscaler_burgers.1} parent=11 // pred_check_branch
          %171 = sbr.rel (%p169) target = $region24
        $region23: #{upscaler_burgers.1} parent=11 // pred_region
          _
        $region24: #{upscaler_burgers.1} parent=11 // pred_fallthru
          _
        // Predicated region
        $region25: #{upscaler_burgers.1} parent=11 // pred_check
          %p172 = pneg %p122
        $region26: #{upscaler_burgers.1} parent=11 // pred_check_branch
          %174 = sbr.rel (%p172) target = $region28
        $region27: #{upscaler_burgers.1} parent=11 // pred_region
          %s176 = ssub.s32 16, 16
          %177 = vsyncadd [#allocation3], %s176
          %s179 = sshll.u32 %s4, 4
          %s180 = int_to_ptr.vmem [resolvable:$true] %s179
          %182 = dma.vmem_to_smem %s180, 16, [#allocation2], [#allocation3]
        $region28: #{upscaler_burgers.1} parent=11 // pred_fallthru
          _
      $region12: #{upscaler_burgers.1} parent=5 // pred_fallthru
        _
      %p183 = scmp.lt.s32.totalorder %s12, 2
      // Predicated region
      $region29: #{upscaler_burgers.1} parent=5 // pred_check
        %p184 = pneg %p183
      $region30: #{upscaler_burgers.1} parent=5 // pred_check_branch
        %186 = sbr.rel (%p184) target = $region32
      $region31: #{upscaler_burgers.1} parent=5 // pred_region
        // Predicated region
        $region33: #{upscaler_burgers.1} parent=31 // pred_check
          %p187 = pneg %p32
        $region34: #{upscaler_burgers.1} parent=31 // pred_check_branch
          %189 = sbr.rel (%p187) target = $region36
        $region35: #{upscaler_burgers.1} parent=31 // pred_region
          %p190 = scmp.lt.s32.totalorder %s12, 1
          %s191 = scalar_select %p190, %s12, 1
          %s192 = smul.addr %s191, 4
          %s193 = smul.addr %s192, 2
          %s194 = scalar_lea.vmem %s0, %s193
        $region36: #{upscaler_burgers.1} parent=31 // pred_fallthru
          _
      $region32: #{upscaler_burgers.1} parent=5 // pred_fallthru
        _
      %p195 = scmp.le.s32.totalorder 1, %s12
      %p196 = scmp.lt.s32.totalorder %s12, 3
      %p197 = pnand %p195, %p196
      %p198 = pneg %p197
      // Predicated region
      $region37: #{upscaler_burgers.1} parent=5 // pred_check
        _
      $region38: #{upscaler_burgers.1} parent=5 // pred_check_branch
        %200 = sbr.rel (%p197) target = $region40
      $region39: #{upscaler_burgers.1} parent=5 // pred_region
        %s201 = ssub.s32 %s12, 1
        // Predicated region
        $region41: #{upscaler_burgers.1} parent=39 // pred_check
          %p202 = pneg %p122
        $region42: #{upscaler_burgers.1} parent=39 // pred_check_branch
          %204 = sbr.rel (%p202) target = $region44
        $region43: #{upscaler_burgers.1} parent=39 // pred_region
          %205 = dma.done [#allocation3], 16
        $region44: #{upscaler_burgers.1} parent=39 // pred_fallthru
          _
        %206 = sfence
        %p207 = scmp.lt.s32.totalorder %s17, 1
        %s208 = scalar_select %p207, %s17, 1
        %s209 = smul.addr %s208, 4
        %s210 = smul.addr %s209, 2
        %s211 = scalar_lea.vmem %s0, %s210
        %p212 = pneg %p38
        %p213 = pneg %p35
        %p214 = pneg %p59
        %p215 = pneg %p56
        %p216 = pneg %p80
        %p217 = pneg %p77
        %p218 = pneg %p101
        %p219 = pneg %p98
        %p220 = pneg %p122
        %p221 = pneg %p119
        %p222 = pneg %p148
        %p223 = pneg %p145
        %p224 = scmp.lt.s32.totalorder %s17, 1
        %s225 = scalar_select %p224, %s17, 1
        %s226 = smul.addr %s225, 3
        %s227 = smul.addr %s226, 8
        %s228 = scalar_lea.vmem %s5, %s227
        %p229 = scmp.lt.s32.totalorder %s17, 1
        %s230 = scalar_select %p229, %s17, 1
        %s231 = smul.addr %s230, 4
        %s232 = smul.addr %s231, 2
        %s233 = scalar_lea.vmem %s0, %s232
        %p234 = scmp.lt.s32.totalorder %s17, 1
        %s235 = scalar_select %p234, %s17, 1
        %s236 = smul.addr %s235, 3
        %s237 = smul.addr %s236, 8
        %s238 = scalar_lea.vmem %s5, %s237
        %v239 = vld [vmem:[%s233] ss:$2 sm:$0x7]
        %v240 = vld [vmem:[%s233] ss:$2 sm:$0xf]
        %s241 = scalar_lea.vmem %s233, 1
        %v242 = vld [vmem:[%s241] ss:$2 sm:$0x7]
        %s243 = scalar_lea.vmem %s233, 1
        %v244 = vld [vmem:[%s243] ss:$2 sm:$0xf]
        %v245 = vld [vmem:[%s1] sm:$0xff]
        %247 = vset.pattern.permute.xlu0 24
        %248 = vperm.xlu0 %247, %v245
        %v249 = vpop.permute.xlu0 %248
        %v252 = vlaneseq
        %v253 = vshrl.u32 %v252, 7
        %v254 = vsub.s32 0, %v253
        %v255 = vrot.slane %v239, %v254
        %v256 = vlaneseq
        %v257 = vshrl.u32 %v256, 7
        %v258 = vsub.s32 1, %v257
        %v259 = vrot.slane %v239, %v258
        %v260 = vlaneseq
        %v261 = vshrl.u32 %v260, 7
        %v262 = vsub.s32 2, %v261
        %v263 = vrot.slane %v239, %v262
        %v267 = vmul.f32 %v249, %v255
        %v268 = vmul.f32 %v249, %v259
        %v269 = vmul.f32 %v249, %v263
        %270 = vset.pattern.permute.xlu0 49
        %271 = vperm.xlu0 %270, %v245
        %v272 = vpop.permute.xlu0 %271
        %v275 = vlaneseq
        %v276 = vshrl.u32 %v275, 7
        %v277 = vsub.s32 0, %v276
        %v278 = vrot.slane %v242, %v277
        %v279 = vlaneseq
        %v280 = vshrl.u32 %v279, 7
        %v281 = vsub.s32 1, %v280
        %v282 = vrot.slane %v242, %v281
        %v283 = vlaneseq
        %v284 = vshrl.u32 %v283, 7
        %v285 = vsub.s32 2, %v284
        %v286 = vrot.slane %v242, %v285
        %v290 = vmul.f32 %v272, %v278
        %v291 = vmul.f32 %v272, %v282
        %v292 = vmul.f32 %v272, %v286
        %v293 = vadd.f32 %v267, %v290
        %v294 = vadd.f32 %v268, %v291
        %v295 = vadd.f32 %v269, %v292
        %296 = vset.pattern.permute.xlu0 22
        %297 = vperm.xlu0 %296, %v245
        %v298 = vpop.permute.xlu0 %297
        %v301 = vlaneseq
        %v302 = vshrl.u32 %v301, 7
        %v303 = vsub.s32 0, %v302
        %v304 = vrot.slane %v240, %v303
        %v305 = vlaneseq
        %v306 = vshrl.u32 %v305, 7
        %v307 = vsub.s32 1, %v306
        %v308 = vrot.slane %v240, %v307
        %v309 = vlaneseq
        %v310 = vshrl.u32 %v309, 7
        %v311 = vsub.s32 2, %v310
        %v312 = vrot.slane %v240, %v311
        %v313 = vlaneseq
        %v314 = vshrl.u32 %v313, 7
        %v315 = vsub.s32 3, %v314
        %v316 = vrot.slane %v240, %v315
        %v321 = vmul.f32 %v298, %v304
        %v322 = vmul.f32 %v298, %v308
        %v323 = vmul.f32 %v298, %v312
        %v324 = vmul.f32 %v298, %v316
        %329 = vrot.lane.b32.xlu0 %v321, 127
        %v330 = vpop.permute.xlu0 %329
        %331 = vrot.lane.b32.xlu0 %v322, 127
        %v332 = vpop.permute.xlu0 %331
        %333 = vrot.lane.b32.xlu0 %v323, 127
        %v334 = vpop.permute.xlu0 %333
        %335 = vrot.lane.b32.xlu0 %v324, 127
        %v336 = vpop.permute.xlu0 %335
        %vm337 = vcmask 1039360
        %v338 = vsel %vm337, %v330, %v332
        %v339 = vsel %vm337, %v332, %v334
        %v340 = vsel %vm337, %v334, %v336
        %v344 = vadd.f32 %v293, %v338
        %v345 = vadd.f32 %v294, %v339
        %v346 = vadd.f32 %v295, %v340
        %347 = vset.pattern.permute.xlu0 47
        %348 = vperm.xlu0 %347, %v245
        %v349 = vpop.permute.xlu0 %348
        %v352 = vlaneseq
        %v353 = vshrl.u32 %v352, 7
        %v354 = vsub.s32 0, %v353
        %v355 = vrot.slane %v244, %v354
        %v356 = vlaneseq
        %v357 = vshrl.u32 %v356, 7
        %v358 = vsub.s32 1, %v357
        %v359 = vrot.slane %v244, %v358
        %v360 = vlaneseq
        %v361 = vshrl.u32 %v360, 7
        %v362 = vsub.s32 2, %v361
        %v363 = vrot.slane %v244, %v362
        %v364 = vlaneseq
        %v365 = vshrl.u32 %v364, 7
        %v366 = vsub.s32 3, %v365
        %v367 = vrot.slane %v244, %v366
        %v372 = vmul.f32 %v349, %v355
        %v373 = vmul.f32 %v349, %v359
        %v374 = vmul.f32 %v349, %v363
        %v375 = vmul.f32 %v349, %v367
        %380 = vrot.lane.b32.xlu0 %v372, 127
        %v381 = vpop.permute.xlu0 %380
        %382 = vrot.lane.b32.xlu0 %v373, 127
        %v383 = vpop.permute.xlu0 %382
        %384 = vrot.lane.b32.xlu0 %v374, 127
        %v385 = vpop.permute.xlu0 %384
        %386 = vrot.lane.b32.xlu0 %v375, 127
        %v387 = vpop.permute.xlu0 %386
        %v388 = vsel %vm337, %v381, %v383
        %v389 = vsel %vm337, %v383, %v385
        %v390 = vsel %vm337, %v385, %v387
        %v394 = vadd.f32 %v344, %v388
        %v395 = vadd.f32 %v345, %v389
        %v396 = vadd.f32 %v346, %v390
        %397 = vset.pattern.permute.xlu0 20
        %398 = vperm.xlu0 %397, %v245
        %v399 = vpop.permute.xlu0 %398
        %v401 = vmul.f32 %v399, %v304
        %v402 = vmul.f32 %v399, %v308
        %v403 = vmul.f32 %v399, %v312
        %v404 = vmul.f32 %v399, %v316
        %409 = vrot.lane.b32.xlu0 %v401, 126
        %v410 = vpop.permute.xlu0 %409
        %411 = vrot.lane.b32.xlu0 %v402, 126
        %v412 = vpop.permute.xlu0 %411
        %413 = vrot.lane.b32.xlu0 %v403, 126
        %v414 = vpop.permute.xlu0 %413
        %415 = vrot.lane.b32.xlu0 %v404, 126
        %v416 = vpop.permute.xlu0 %415
        %vm417 = vcmask 1031168
        %v418 = vsel %vm417, %v410, %v412
        %v419 = vsel %vm417, %v412, %v414
        %v420 = vsel %vm417, %v414, %v416
        %v424 = vadd.f32 %v394, %v418
        %v425 = vadd.f32 %v395, %v419
        %v426 = vadd.f32 %v396, %v420
        %427 = vset.pattern.permute.xlu0 45
        %428 = vperm.xlu0 %427, %v245
        %v429 = vpop.permute.xlu0 %428
        %v431 = vmul.f32 %v429, %v355
        %v432 = vmul.f32 %v429, %v359
        %v433 = vmul.f32 %v429, %v363
        %v434 = vmul.f32 %v429, %v367
        %439 = vrot.lane.b32.xlu0 %v431, 126
        %v440 = vpop.permute.xlu0 %439
        %441 = vrot.lane.b32.xlu0 %v432, 126
        %v442 = vpop.permute.xlu0 %441
        %443 = vrot.lane.b32.xlu0 %v433, 126
        %v444 = vpop.permute.xlu0 %443
        %445 = vrot.lane.b32.xlu0 %v434, 126
        %v446 = vpop.permute.xlu0 %445
        %v447 = vsel %vm417, %v440, %v442
        %v448 = vsel %vm417, %v442, %v444
        %v449 = vsel %vm417, %v444, %v446
        %v453 = vadd.f32 %v424, %v447
        %v454 = vadd.f32 %v425, %v448
        %v455 = vadd.f32 %v426, %v449
        %456 = vset.pattern.permute.xlu0 14
        %457 = vperm.xlu0 %456, %v245
        %v458 = vpop.permute.xlu0 %457
        %v460 = vmul.f32 %v458, %v304
        %v461 = vmul.f32 %v458, %v308
        %v462 = vmul.f32 %v458, %v312
        %v463 = vmul.f32 %v458, %v316
        %468 = vrot.lane.b32.xlu0 %v460, 110
        %v469 = vpop.permute.xlu0 %468
        %470 = vrot.lane.b32.xlu0 %v461, 110
        %v471 = vpop.permute.xlu0 %470
        %472 = vrot.lane.b32.xlu0 %v462, 110
        %v473 = vpop.permute.xlu0 %472
        %474 = vrot.lane.b32.xlu0 %v463, 110
        %v475 = vpop.permute.xlu0 %474
        %vm476 = vcmask 900096
        %v477 = vsel %vm476, %v469, %v471
        %v478 = vsel %vm476, %v471, %v473
        %v479 = vsel %vm476, %v473, %v475
        %v483 = vadd.f32 %v453, %v477
        %v484 = vadd.f32 %v454, %v478
        %v485 = vadd.f32 %v455, %v479
        %486 = vset.pattern.permute.xlu0 39
        %487 = vperm.xlu0 %486, %v245
        %v488 = vpop.permute.xlu0 %487
        %v490 = vmul.f32 %v488, %v355
        %v491 = vmul.f32 %v488, %v359
        %v492 = vmul.f32 %v488, %v363
        %v493 = vmul.f32 %v488, %v367
        %498 = vrot.lane.b32.xlu0 %v490, 110
        %v499 = vpop.permute.xlu0 %498
        %500 = vrot.lane.b32.xlu0 %v491, 110
        %v501 = vpop.permute.xlu0 %500
        %502 = vrot.lane.b32.xlu0 %v492, 110
        %v503 = vpop.permute.xlu0 %502
        %504 = vrot.lane.b32.xlu0 %v493, 110
        %v505 = vpop.permute.xlu0 %504
        %v506 = vsel %vm476, %v499, %v501
        %v507 = vsel %vm476, %v501, %v503
        %v508 = vsel %vm476, %v503, %v505
        %v512 = vadd.f32 %v483, %v506
        %v513 = vadd.f32 %v484, %v507
        %v514 = vadd.f32 %v485, %v508
        %515 = vset.pattern.permute.xlu0 12
        %516 = vperm.xlu0 %515, %v245
        %v517 = vpop.permute.xlu0 %516
        %v519 = vmul.f32 %v517, %v304
        %v520 = vmul.f32 %v517, %v308
        %v521 = vmul.f32 %v517, %v312
        %v522 = vmul.f32 %v517, %v316
        %527 = vrot.lane.b32.xlu0 %v519, 109
        %v528 = vpop.permute.xlu0 %527
        %529 = vrot.lane.b32.xlu0 %v520, 109
        %v530 = vpop.permute.xlu0 %529
        %531 = vrot.lane.b32.xlu0 %v521, 109
        %v532 = vpop.permute.xlu0 %531
        %533 = vrot.lane.b32.xlu0 %v522, 109
        %v534 = vpop.permute.xlu0 %533
        %vm535 = vcmask 891904
        %v536 = vsel %vm535, %v528, %v530
        %v537 = vsel %vm535, %v530, %v532
        %v538 = vsel %vm535, %v532, %v534
        %v542 = vadd.f32 %v512, %v536
        %v543 = vadd.f32 %v513, %v537
        %v544 = vadd.f32 %v514, %v538
        %545 = vset.pattern.permute.xlu0 37
        %546 = vperm.xlu0 %545, %v245
        %v547 = vpop.permute.xlu0 %546
        %v549 = vmul.f32 %v547, %v355
        %v550 = vmul.f32 %v547, %v359
        %v551 = vmul.f32 %v547, %v363
        %v552 = vmul.f32 %v547, %v367
        %557 = vrot.lane.b32.xlu0 %v549, 109
        %v558 = vpop.permute.xlu0 %557
        %559 = vrot.lane.b32.xlu0 %v550, 109
        %v560 = vpop.permute.xlu0 %559
        %561 = vrot.lane.b32.xlu0 %v551, 109
        %v562 = vpop.permute.xlu0 %561
        %563 = vrot.lane.b32.xlu0 %v552, 109
        %v564 = vpop.permute.xlu0 %563
        %v565 = vsel %vm535, %v558, %v560
        %v566 = vsel %vm535, %v560, %v562
        %v567 = vsel %vm535, %v562, %v564
        %v571 = vadd.f32 %v542, %v565
        %v572 = vadd.f32 %v543, %v566
        %v573 = vadd.f32 %v544, %v567
        %574 = vset.pattern.permute.xlu0 10
        %575 = vperm.xlu0 %574, %v245
        %v576 = vpop.permute.xlu0 %575
        %v578 = vmul.f32 %v576, %v304
        %v579 = vmul.f32 %v576, %v308
        %v580 = vmul.f32 %v576, %v312
        %v581 = vmul.f32 %v576, %v316
        %586 = vrot.lane.b32.xlu0 %v578, 108
        %v587 = vpop.permute.xlu0 %586
        %588 = vrot.lane.b32.xlu0 %v579, 108
        %v589 = vpop.permute.xlu0 %588
        %590 = vrot.lane.b32.xlu0 %v580, 108
        %v591 = vpop.permute.xlu0 %590
        %592 = vrot.lane.b32.xlu0 %v581, 108
        %v593 = vpop.permute.xlu0 %592
        %vm594 = vcmask 883712
        %v595 = vsel %vm594, %v587, %v589
        %v596 = vsel %vm594, %v589, %v591
        %v597 = vsel %vm594, %v591, %v593
        %v601 = vadd.f32 %v571, %v595
        %v602 = vadd.f32 %v572, %v596
        %v603 = vadd.f32 %v573, %v597
        %604 = vset.pattern.permute.xlu0 35
        %605 = vperm.xlu0 %604, %v245
        %v606 = vpop.permute.xlu0 %605
        %v608 = vmul.f32 %v606, %v355
        %v609 = vmul.f32 %v606, %v359
        %v610 = vmul.f32 %v606, %v363
        %v611 = vmul.f32 %v606, %v367
        %616 = vrot.lane.b32.xlu0 %v608, 108
        %v617 = vpop.permute.xlu0 %616
        %618 = vrot.lane.b32.xlu0 %v609, 108
        %v619 = vpop.permute.xlu0 %618
        %620 = vrot.lane.b32.xlu0 %v610, 108
        %v621 = vpop.permute.xlu0 %620
        %622 = vrot.lane.b32.xlu0 %v611, 108
        %v623 = vpop.permute.xlu0 %622
        %v624 = vsel %vm594, %v617, %v619
        %v625 = vsel %vm594, %v619, %v621
        %v626 = vsel %vm594, %v621, %v623
        %v630 = vadd.f32 %v601, %v624
        %v631 = vadd.f32 %v602, %v625
        %v632 = vadd.f32 %v603, %v626
        %633 = vset.pattern.permute.xlu0 4
        %634 = vperm.xlu0 %633, %v245
        %v635 = vpop.permute.xlu0 %634
        %v637 = vmul.f32 %v635, %v304
        %v638 = vmul.f32 %v635, %v308
        %v639 = vmul.f32 %v635, %v312
        %v640 = vmul.f32 %v635, %v316
        %645 = vrot.lane.b32.xlu0 %v637, 92
        %v646 = vpop.permute.xlu0 %645
        %647 = vrot.lane.b32.xlu0 %v638, 92
        %v648 = vpop.permute.xlu0 %647
        %649 = vrot.lane.b32.xlu0 %v639, 92
        %v650 = vpop.permute.xlu0 %649
        %651 = vrot.lane.b32.xlu0 %v640, 92
        %v652 = vpop.permute.xlu0 %651
        %vm653 = vcmask 752640
        %v654 = vsel %vm653, %v646, %v648
        %v655 = vsel %vm653, %v648, %v650
        %v656 = vsel %vm653, %v650, %v652
        %v660 = vadd.f32 %v630, %v654
        %v661 = vadd.f32 %v631, %v655
        %v662 = vadd.f32 %v632, %v656
        %663 = vset.pattern.permute.xlu0 29
        %664 = vperm.xlu0 %663, %v245
        %v665 = vpop.permute.xlu0 %664
        %v667 = vmul.f32 %v665, %v355
        %v668 = vmul.f32 %v665, %v359
        %v669 = vmul.f32 %v665, %v363
        %v670 = vmul.f32 %v665, %v367
        %675 = vrot.lane.b32.xlu0 %v667, 92
        %v676 = vpop.permute.xlu0 %675
        %677 = vrot.lane.b32.xlu0 %v668, 92
        %v678 = vpop.permute.xlu0 %677
        %679 = vrot.lane.b32.xlu0 %v669, 92
        %v680 = vpop.permute.xlu0 %679
        %681 = vrot.lane.b32.xlu0 %v670, 92
        %v682 = vpop.permute.xlu0 %681
        %v683 = vsel %vm653, %v676, %v678
        %v684 = vsel %vm653, %v678, %v680
        %v685 = vsel %vm653, %v680, %v682
        %v689 = vadd.f32 %v660, %v683
        %v690 = vadd.f32 %v661, %v684
        %v691 = vadd.f32 %v662, %v685
        %692 = vset.pattern.permute.xlu0 2
        %693 = vperm.xlu0 %692, %v245
        %v694 = vpop.permute.xlu0 %693
        %v696 = vmul.f32 %v694, %v304
        %v697 = vmul.f32 %v694, %v308
        %v698 = vmul.f32 %v694, %v312
        %v699 = vmul.f32 %v694, %v316
        %704 = vrot.lane.b32.xlu0 %v696, 91
        %v705 = vpop.permute.xlu0 %704
        %706 = vrot.lane.b32.xlu0 %v697, 91
        %v707 = vpop.permute.xlu0 %706
        %708 = vrot.lane.b32.xlu0 %v698, 91
        %v709 = vpop.permute.xlu0 %708
        %710 = vrot.lane.b32.xlu0 %v699, 91
        %v711 = vpop.permute.xlu0 %710
        %vm712 = vcmask 744448
        %v713 = vsel %vm712, %v705, %v707
        %v714 = vsel %vm712, %v707, %v709
        %v715 = vsel %vm712, %v709, %v711
        %v719 = vadd.f32 %v689, %v713
        %v720 = vadd.f32 %v690, %v714
        %v721 = vadd.f32 %v691, %v715
        %722 = vset.pattern.permute.xlu0 27
        %723 = vperm.xlu0 %722, %v245
        %v724 = vpop.permute.xlu0 %723
        %v726 = vmul.f32 %v724, %v355
        %v727 = vmul.f32 %v724, %v359
        %v728 = vmul.f32 %v724, %v363
        %v729 = vmul.f32 %v724, %v367
        %734 = vrot.lane.b32.xlu0 %v726, 91
        %v735 = vpop.permute.xlu0 %734
        %736 = vrot.lane.b32.xlu0 %v727, 91
        %v737 = vpop.permute.xlu0 %736
        %738 = vrot.lane.b32.xlu0 %v728, 91
        %v739 = vpop.permute.xlu0 %738
        %740 = vrot.lane.b32.xlu0 %v729, 91
        %v741 = vpop.permute.xlu0 %740
        %v742 = vsel %vm712, %v735, %v737
        %v743 = vsel %vm712, %v737, %v739
        %v744 = vsel %vm712, %v739, %v741
        %v748 = vadd.f32 %v719, %v742
        %v749 = vadd.f32 %v720, %v743
        %v750 = vadd.f32 %v721, %v744
        %751 = vset.pattern.permute.xlu0 0
        %752 = vperm.xlu0 %751, %v245
        %v753 = vpop.permute.xlu0 %752
        %v755 = vmul.f32 %v753, %v304
        %v756 = vmul.f32 %v753, %v308
        %v757 = vmul.f32 %v753, %v312
        %v758 = vmul.f32 %v753, %v316
        %763 = vrot.lane.b32.xlu0 %v755, 90
        %v764 = vpop.permute.xlu0 %763
        %765 = vrot.lane.b32.xlu0 %v756, 90
        %v766 = vpop.permute.xlu0 %765
        %767 = vrot.lane.b32.xlu0 %v757, 90
        %v768 = vpop.permute.xlu0 %767
        %769 = vrot.lane.b32.xlu0 %v758, 90
        %v770 = vpop.permute.xlu0 %769
        %vm771 = vcmask 736256
        %v772 = vsel %vm771, %v764, %v766
        %v773 = vsel %vm771, %v766, %v768
        %v774 = vsel %vm771, %v768, %v770
        %v778 = vadd.f32 %v748, %v772
        %v779 = vadd.f32 %v749, %v773
        %v780 = vadd.f32 %v750, %v774
        %781 = vset.pattern.permute.xlu0 25
        %782 = vperm.xlu0 %781, %v245
        %v783 = vpop.permute.xlu0 %782
        %v785 = vmul.f32 %v783, %v355
        %v786 = vmul.f32 %v783, %v359
        %v787 = vmul.f32 %v783, %v363
        %v788 = vmul.f32 %v783, %v367
        %793 = vrot.lane.b32.xlu0 %v785, 90
        %v794 = vpop.permute.xlu0 %793
        %795 = vrot.lane.b32.xlu0 %v786, 90
        %v796 = vpop.permute.xlu0 %795
        %797 = vrot.lane.b32.xlu0 %v787, 90
        %v798 = vpop.permute.xlu0 %797
        %799 = vrot.lane.b32.xlu0 %v788, 90
        %v800 = vpop.permute.xlu0 %799
        %v801 = vsel %vm771, %v794, %v796
        %v802 = vsel %vm771, %v796, %v798
        %v803 = vsel %vm771, %v798, %v800
        %v807 = vadd.f32 %v778, %v801
        %v808 = vadd.f32 %v779, %v802
        %v809 = vadd.f32 %v780, %v803
        %v810 = vld [vmem:[%s2] sm:$0xff]
        %812 = vset.pattern.permute.xlu0 0
        %813 = vperm.xlu0 %812, %v810
        %v814 = vpop.permute.xlu0 %813
        %v816 = vadd.f32 %v807, %v814
        %v817 = vadd.f32 %v808, %v814
        %v818 = vadd.f32 %v809, %v814
        %v819 = vtanh.pop %v816
        %v820 = vtanh.pop %v817
        %v821 = vtanh.pop %v818
        %v822 = vld [vmem:[%s3] sm:$0xff]
        %824 = vset.pattern.permute.xlu0 0
        %825 = vperm.xlu0 %824, %v822
        %v826 = vpop.permute.xlu0 %825
        %v828 = vmul.f32 %v819, %v826
        %v829 = vmul.f32 %v820, %v826
        %v830 = vmul.f32 %v821, %v826
        %v831 = vrot.slane %v828, 4
        %v832 = vadd.f32 %v828, %v831
        %v833 = vrot.slane %v832, 2
        %v834 = vadd.f32 %v832, %v833
        %v835 = vrot.slane %v834, 1
        %v836 = vadd.f32 %v834, %v835
        %v837 = vrot.slane %v829, 4
        %v838 = vadd.f32 %v829, %v837
        %v839 = vrot.slane %v838, 2
        %v840 = vadd.f32 %v838, %v839
        %v841 = vrot.slane %v840, 1
        %v842 = vadd.f32 %v840, %v841
        %v843 = vrot.slane %v830, 4
        %v844 = vadd.f32 %v830, %v843
        %v845 = vrot.slane %v844, 2
        %v846 = vadd.f32 %v844, %v845
        %v847 = vrot.slane %v846, 1
        %v848 = vadd.f32 %v846, %v847
        %s849 = sld [smem:[#allocation2]]
        %v850 = vstv %s849
        %v851 = vadd.f32 %v836, %v850
        %v852 = vadd.f32 %v842, %v850
        %v853 = vadd.f32 %v848, %v850
        %v857 = vcombine.low %v851, %v852
        %v859 = vunpack.c.l.s4 1966171168
        %v860 = vunpack.c.0.s8 %v859
        %v861 = vlaneseq
        %v862 = vshrl.u32 %v861, 7
        %v863 = vsub.s32 %v860, %v862
        %v864 = vrot.slane %v857, %v863
        %v866 = vunpack.c.l.s4 1966171168
        %v867 = vunpack.c.0.s8 %v866
        %v868 = vlaneseq
        %v869 = vshrl.u32 %v868, 7
        %v870 = vsub.s32 %v867, %v869
        %v871 = vrot.slane %v853, %v870
        %v872 = vcombine.low %v864, %v871
        %v874 = vunpack.c.l.s4 1966171168
        %v875 = vunpack.c.0.s8 %v874
        %v876 = vlaneseq
        %v877 = vshrl.u32 %v876, 7
        %v878 = vsub.s32 %v875, %v877
        %v879 = vrot.slane %v872, %v878
        %v881 = vlaneseq
        %vm882 = vcmp.ge.s32.totalorder %v881, 0
        %vm883 = vcmp.lt.s32.totalorder %v881, 384
        %vm884 = vmand %vm882, %vm883
        %885 = vst.msk [vmem:[%s238] ss:$8 sm:$0x7] %vm884, %v879
        %886 = vst.msk [vmem:[%s238] ss:$8 sm:$0x0] %vm884, %v879
        %v887 = vld [vmem:[%s3] sm:$0xff]
        %889 = vset.pattern.permute.xlu0 1
        %890 = vperm.xlu0 %889, %v887
        %v891 = vpop.permute.xlu0 %890
        %v893 = vmul.f32 %v819, %v891
        %v894 = vmul.f32 %v820, %v891
        %v895 = vmul.f32 %v821, %v891
        %v896 = vrot.slane %v893, 4
        %v897 = vadd.f32 %v893, %v896
        %v898 = vrot.slane %v897, 2
        %v899 = vadd.f32 %v897, %v898
        %v900 = vrot.slane %v899, 1
        %v901 = vadd.f32 %v899, %v900
        %v902 = vrot.slane %v894, 4
        %v903 = vadd.f32 %v894, %v902
        %v904 = vrot.slane %v903, 2
        %v905 = vadd.f32 %v903, %v904
        %v906 = vrot.slane %v905, 1
        %v907 = vadd.f32 %v905, %v906
        %v908 = vrot.slane %v895, 4
        %v909 = vadd.f32 %v895, %v908
        %v910 = vrot.slane %v909, 2
        %v911 = vadd.f32 %v909, %v910
        %v912 = vrot.slane %v911, 1
        %v913 = vadd.f32 %v911, %v912
        %s914 = sld [smem:[#allocation2 + $0x1]]
        %v915 = vstv %s914
        %v916 = vadd.f32 %v901, %v915
        %v917 = vadd.f32 %v907, %v915
        %v918 = vadd.f32 %v913, %v915
        %v922 = vcombine.low %v916, %v917
        %v924 = vunpack.c.l.s4 1966171168
        %v925 = vunpack.c.0.s8 %v924
        %v926 = vlaneseq
        %v927 = vshrl.u32 %v926, 7
        %v928 = vsub.s32 %v925, %v927
        %v929 = vrot.slane %v922, %v928
        %v931 = vunpack.c.l.s4 1966171168
        %v932 = vunpack.c.0.s8 %v931
        %v933 = vlaneseq
        %v934 = vshrl.u32 %v933, 7
        %v935 = vsub.s32 %v932, %v934
        %v936 = vrot.slane %v918, %v935
        %v937 = vcombine.low %v929, %v936
        %v939 = vunpack.c.l.s4 1966171168
        %v940 = vunpack.c.0.s8 %v939
        %v941 = vlaneseq
        %v942 = vshrl.u32 %v941, 7
        %v943 = vsub.s32 %v940, %v942
        %v944 = vrot.slane %v937, %v943
        %s946 = scalar_lea.vmem %s238, 1
        %947 = vst.msk [vmem:[%s946] ss:$8 sm:$0x7] %vm884, %v944
        %948 = vst.msk [vmem:[%s946] ss:$8 sm:$0x0] %vm884, %v944
        %v949 = vld [vmem:[%s1] sm:$0xff]
        %951 = vset.pattern.permute.xlu0 23
        %952 = vperm.xlu0 %951, %v949
        %v953 = vpop.permute.xlu0 %952
        %v955 = vmul.f32 %v953, %v304
        %v956 = vmul.f32 %v953, %v308
        %v957 = vmul.f32 %v953, %v312
        %v958 = vmul.f32 %v953, %v316
        %959 = vset.pattern.permute.xlu0 48
        %960 = vperm.xlu0 %959, %v949
        %v961 = vpop.permute.xlu0 %960
        %v963 = vmul.f32 %v961, %v355
        %v964 = vmul.f32 %v961, %v359
        %v965 = vmul.f32 %v961, %v363
        %v966 = vmul.f32 %v961, %v367
        %v967 = vadd.f32 %v955, %v963
        %v968 = vadd.f32 %v956, %v964
        %v969 = vadd.f32 %v957, %v965
        %v970 = vadd.f32 %v958, %v966
        %971 = vset.pattern.permute.xlu0 21
        %972 = vperm.xlu0 %971, %v949
        %v973 = vpop.permute.xlu0 %972
        %v975 = vmul.f32 %v973, %v304
        %v976 = vmul.f32 %v973, %v308
        %v977 = vmul.f32 %v973, %v312
        %v978 = vmul.f32 %v973, %v316
        %983 = vrot.lane.b32.xlu0 %v975, 127
        %v984 = vpop.permute.xlu0 %983
        %985 = vrot.lane.b32.xlu0 %v976, 127
        %v986 = vpop.permute.xlu0 %985
        %987 = vrot.lane.b32.xlu0 %v977, 127
        %v988 = vpop.permute.xlu0 %987
        %989 = vrot.lane.b32.xlu0 %v978, 127
        %v990 = vpop.permute.xlu0 %989
        %v991 = vsel %vm337, %v984, %v986
        %v992 = vsel %vm337, %v986, %v988
        %v993 = vsel %vm337, %v988, %v990
        %v998 = vadd.f32 %v967, %v991
        %v999 = vadd.f32 %v968, %v992
        %v1000 = vadd.f32 %v969, %v993
        %v1001 = vadd.f32 %v970, %v990
        %1002 = vset.pattern.permute.xlu0 46
        %1003 = vperm.xlu0 %1002, %v949
        %v1004 = vpop.permute.xlu0 %1003
        %v1006 = vmul.f32 %v1004, %v355
        %v1007 = vmul.f32 %v1004, %v359
        %v1008 = vmul.f32 %v1004, %v363
        %v1009 = vmul.f32 %v1004, %v367
        %1014 = vrot.lane.b32.xlu0 %v1006, 127
        %v1015 = vpop.permute.xlu0 %1014
        %1016 = vrot.lane.b32.xlu0 %v1007, 127
        %v1017 = vpop.permute.xlu0 %1016
        %1018 = vrot.lane.b32.xlu0 %v1008, 127
        %v1019 = vpop.permute.xlu0 %1018
        %1020 = vrot.lane.b32.xlu0 %v1009, 127
        %v1021 = vpop.permute.xlu0 %1020
        %v1022 = vsel %vm337, %v1015, %v1017
        %v1023 = vsel %vm337, %v1017, %v1019
        %v1024 = vsel %vm337, %v1019, %v1021
        %v1029 = vadd.f32 %v998, %v1022
        %v1030 = vadd.f32 %v999, %v1023
        %v1031 = vadd.f32 %v1000, %v1024
        %v1032 = vadd.f32 %v1001, %v1021
        %1033 = vset.pattern.permute.xlu0 13
        %1034 = vperm.xlu0 %1033, %v949
        %v1035 = vpop.permute.xlu0 %1034
        %v1037 = vmul.f32 %v1035, %v304
        %v1038 = vmul.f32 %v1035, %v308
        %v1039 = vmul.f32 %v1035, %v312
        %v1040 = vmul.f32 %v1035, %v316
        %1045 = vrot.lane.b32.xlu0 %v1037, 110
        %v1046 = vpop.permute.xlu0 %1045
        %1047 = vrot.lane.b32.xlu0 %v1038, 110
        %v1048 = vpop.permute.xlu0 %1047
        %1049 = vrot.lane.b32.xlu0 %v1039, 110
        %v1050 = vpop.permute.xlu0 %1049
        %1051 = vrot.lane.b32.xlu0 %v1040, 110
        %v1052 = vpop.permute.xlu0 %1051
        %v1053 = vsel %vm476, %v1046, %v1048
        %v1054 = vsel %vm476, %v1048, %v1050
        %v1055 = vsel %vm476, %v1050, %v1052
        %v1060 = vadd.f32 %v1029, %v1053
        %v1061 = vadd.f32 %v1030, %v1054
        %v1062 = vadd.f32 %v1031, %v1055
        %v1063 = vadd.f32 %v1032, %v1052
        %1064 = vset.pattern.permute.xlu0 38
        %1065 = vperm.xlu0 %1064, %v949
        %v1066 = vpop.permute.xlu0 %1065
        %v1068 = vmul.f32 %v1066, %v355
        %v1069 = vmul.f32 %v1066, %v359
        %v1070 = vmul.f32 %v1066, %v363
        %v1071 = vmul.f32 %v1066, %v367
        %1076 = vrot.lane.b32.xlu0 %v1068, 110
        %v1077 = vpop.permute.xlu0 %1076
        %1078 = vrot.lane.b32.xlu0 %v1069, 110
        %v1079 = vpop.permute.xlu0 %1078
        %1080 = vrot.lane.b32.xlu0 %v1070, 110
        %v1081 = vpop.permute.xlu0 %1080
        %1082 = vrot.lane.b32.xlu0 %v1071, 110
        %v1083 = vpop.permute.xlu0 %1082
        %v1084 = vsel %vm476, %v1077, %v1079
        %v1085 = vsel %vm476, %v1079, %v1081
        %v1086 = vsel %vm476, %v1081, %v1083
        %v1091 = vadd.f32 %v1060, %v1084
        %v1092 = vadd.f32 %v1061, %v1085
        %v1093 = vadd.f32 %v1062, %v1086
        %v1094 = vadd.f32 %v1063, %v1083
        %1095 = vset.pattern.permute.xlu0 11
        %1096 = vperm.xlu0 %1095, %v949
        %v1097 = vpop.permute.xlu0 %1096
        %v1099 = vmul.f32 %v1097, %v304
        %v1100 = vmul.f32 %v1097, %v308
        %v1101 = vmul.f32 %v1097, %v312
        %v1102 = vmul.f32 %v1097, %v316
        %1107 = vrot.lane.b32.xlu0 %v1099, 109
        %v1108 = vpop.permute.xlu0 %1107
        %1109 = vrot.lane.b32.xlu0 %v1100, 109
        %v1110 = vpop.permute.xlu0 %1109
        %1111 = vrot.lane.b32.xlu0 %v1101, 109
        %v1112 = vpop.permute.xlu0 %1111
        %1113 = vrot.lane.b32.xlu0 %v1102, 109
        %v1114 = vpop.permute.xlu0 %1113
        %v1115 = vsel %vm535, %v1108, %v1110
        %v1116 = vsel %vm535, %v1110, %v1112
        %v1117 = vsel %vm535, %v1112, %v1114
        %v1122 = vadd.f32 %v1091, %v1115
        %v1123 = vadd.f32 %v1092, %v1116
        %v1124 = vadd.f32 %v1093, %v1117
        %v1125 = vadd.f32 %v1094, %v1114
        %1126 = vset.pattern.permute.xlu0 36
        %1127 = vperm.xlu0 %1126, %v949
        %v1128 = vpop.permute.xlu0 %1127
        %v1130 = vmul.f32 %v1128, %v355
        %v1131 = vmul.f32 %v1128, %v359
        %v1132 = vmul.f32 %v1128, %v363
        %v1133 = vmul.f32 %v1128, %v367
        %1138 = vrot.lane.b32.xlu0 %v1130, 109
        %v1139 = vpop.permute.xlu0 %1138
        %1140 = vrot.lane.b32.xlu0 %v1131, 109
        %v1141 = vpop.permute.xlu0 %1140
        %1142 = vrot.lane.b32.xlu0 %v1132, 109
        %v1143 = vpop.permute.xlu0 %1142
        %1144 = vrot.lane.b32.xlu0 %v1133, 109
        %v1145 = vpop.permute.xlu0 %1144
        %v1146 = vsel %vm535, %v1139, %v1141
        %v1147 = vsel %vm535, %v1141, %v1143
        %v1148 = vsel %vm535, %v1143, %v1145
        %v1153 = vadd.f32 %v1122, %v1146
        %v1154 = vadd.f32 %v1123, %v1147
        %v1155 = vadd.f32 %v1124, %v1148
        %v1156 = vadd.f32 %v1125, %v1145
        %1157 = vset.pattern.permute.xlu0 3
        %1158 = vperm.xlu0 %1157, %v949
        %v1159 = vpop.permute.xlu0 %1158
        %v1161 = vmul.f32 %v1159, %v304
        %v1162 = vmul.f32 %v1159, %v308
        %v1163 = vmul.f32 %v1159, %v312
        %v1164 = vmul.f32 %v1159, %v316
        %1169 = vrot.lane.b32.xlu0 %v1161, 92
        %v1170 = vpop.permute.xlu0 %1169
        %1171 = vrot.lane.b32.xlu0 %v1162, 92
        %v1172 = vpop.permute.xlu0 %1171
        %1173 = vrot.lane.b32.xlu0 %v1163, 92
        %v1174 = vpop.permute.xlu0 %1173
        %1175 = vrot.lane.b32.xlu0 %v1164, 92
        %v1176 = vpop.permute.xlu0 %1175
        %v1177 = vsel %vm653, %v1170, %v1172
        %v1178 = vsel %vm653, %v1172, %v1174
        %v1179 = vsel %vm653, %v1174, %v1176
        %v1184 = vadd.f32 %v1153, %v1177
        %v1185 = vadd.f32 %v1154, %v1178
        %v1186 = vadd.f32 %v1155, %v1179
        %v1187 = vadd.f32 %v1156, %v1176
        %1188 = vset.pattern.permute.xlu0 28
        %1189 = vperm.xlu0 %1188, %v949
        %v1190 = vpop.permute.xlu0 %1189
        %v1192 = vmul.f32 %v1190, %v355
        %v1193 = vmul.f32 %v1190, %v359
        %v1194 = vmul.f32 %v1190, %v363
        %v1195 = vmul.f32 %v1190, %v367
        %1200 = vrot.lane.b32.xlu0 %v1192, 92
        %v1201 = vpop.permute.xlu0 %1200
        %1202 = vrot.lane.b32.xlu0 %v1193, 92
        %v1203 = vpop.permute.xlu0 %1202
        %1204 = vrot.lane.b32.xlu0 %v1194, 92
        %v1205 = vpop.permute.xlu0 %1204
        %1206 = vrot.lane.b32.xlu0 %v1195, 92
        %v1207 = vpop.permute.xlu0 %1206
        %v1208 = vsel %vm653, %v1201, %v1203
        %v1209 = vsel %vm653, %v1203, %v1205
        %v1210 = vsel %vm653, %v1205, %v1207
        %v1215 = vadd.f32 %v1184, %v1208
        %v1216 = vadd.f32 %v1185, %v1209
        %v1217 = vadd.f32 %v1186, %v1210
        %v1218 = vadd.f32 %v1187, %v1207
        %1219 = vset.pattern.permute.xlu0 1
        %1220 = vperm.xlu0 %1219, %v949
        %v1221 = vpop.permute.xlu0 %1220
        %v1223 = vmul.f32 %v1221, %v304
        %v1224 = vmul.f32 %v1221, %v308
        %v1225 = vmul.f32 %v1221, %v312
        %v1226 = vmul.f32 %v1221, %v316
        %1231 = vrot.lane.b32.xlu0 %v1223, 91
        %v1232 = vpop.permute.xlu0 %1231
        %1233 = vrot.lane.b32.xlu0 %v1224, 91
        %v1234 = vpop.permute.xlu0 %1233
        %1235 = vrot.lane.b32.xlu0 %v1225, 91
        %v1236 = vpop.permute.xlu0 %1235
        %1237 = vrot.lane.b32.xlu0 %v1226, 91
        %v1238 = vpop.permute.xlu0 %1237
        %v1239 = vsel %vm712, %v1232, %v1234
        %v1240 = vsel %vm712, %v1234, %v1236
        %v1241 = vsel %vm712, %v1236, %v1238
        %v1246 = vadd.f32 %v1215, %v1239
        %v1247 = vadd.f32 %v1216, %v1240
        %v1248 = vadd.f32 %v1217, %v1241
        %v1249 = vadd.f32 %v1218, %v1238
        %1250 = vset.pattern.permute.xlu0 26
        %1251 = vperm.xlu0 %1250, %v949
        %v1252 = vpop.permute.xlu0 %1251
        %v1254 = vmul.f32 %v1252, %v355
        %v1255 = vmul.f32 %v1252, %v359
        %v1256 = vmul.f32 %v1252, %v363
        %v1257 = vmul.f32 %v1252, %v367
        %1262 = vrot.lane.b32.xlu0 %v1254, 91
        %v1263 = vpop.permute.xlu0 %1262
        %1264 = vrot.lane.b32.xlu0 %v1255, 91
        %v1265 = vpop.permute.xlu0 %1264
        %1266 = vrot.lane.b32.xlu0 %v1256, 91
        %v1267 = vpop.permute.xlu0 %1266
        %1268 = vrot.lane.b32.xlu0 %v1257, 91
        %v1269 = vpop.permute.xlu0 %1268
        %v1270 = vsel %vm712, %v1263, %v1265
        %v1271 = vsel %vm712, %v1265, %v1267
        %v1272 = vsel %vm712, %v1267, %v1269
        %v1277 = vadd.f32 %v1246, %v1270
        %v1278 = vadd.f32 %v1247, %v1271
        %v1279 = vadd.f32 %v1248, %v1272
        %v1280 = vadd.f32 %v1249, %v1269
        %v1281 = vld [vmem:[%s2] sm:$0xff]
        %1283 = vset.pattern.permute.xlu0 0
        %1284 = vperm.xlu0 %1283, %v1281
        %v1285 = vpop.permute.xlu0 %1284
        %v1287 = vadd.f32 %v1277, %v1285
        %v1288 = vadd.f32 %v1278, %v1285
        %v1289 = vadd.f32 %v1279, %v1285
        %v1290 = vadd.f32 %v1280, %v1285
        %v1291 = vtanh.pop %v1287
        %v1292 = vtanh.pop %v1288
        %v1293 = vtanh.pop %v1289
        %v1294 = vtanh.pop %v1290
        %v1295 = vld [vmem:[%s3] sm:$0xff]
        %1297 = vset.pattern.permute.xlu0 0
        %1298 = vperm.xlu0 %1297, %v1295
        %v1299 = vpop.permute.xlu0 %1298
        %v1301 = vmul.f32 %v1291, %v1299
        %v1302 = vmul.f32 %v1292, %v1299
        %v1303 = vmul.f32 %v1293, %v1299
        %v1304 = vmul.f32 %v1294, %v1299
        %vm1305 = vcmask 1047560
        %v1306 = vsel %vm1305, %v1301, 0.0
        %v1307 = vrot.slane %v1306, 4
        %v1308 = vadd.f32 %v1306, %v1307
        %v1309 = vrot.slane %v1308, 2
        %v1310 = vadd.f32 %v1308, %v1309
        %v1311 = vrot.slane %v1310, 1
        %v1312 = vadd.f32 %v1310, %v1311
        %v1313 = vrot.slane %v1302, 4
        %v1314 = vadd.f32 %v1302, %v1313
        %v1315 = vrot.slane %v1314, 2
        %v1316 = vadd.f32 %v1314, %v1315
        %v1317 = vrot.slane %v1316, 1
        %v1318 = vadd.f32 %v1316, %v1317
        %v1319 = vrot.slane %v1303, 4
        %v1320 = vadd.f32 %v1303, %v1319
        %v1321 = vrot.slane %v1320, 2
        %v1322 = vadd.f32 %v1320, %v1321
        %v1323 = vrot.slane %v1322, 1
        %v1324 = vadd.f32 %v1322, %v1323
        %vm1325 = vcmask 7168
        %v1326 = vsel %vm1325, %v1304, 0.0
        %v1327 = vrot.slane %v1326, 4
        %v1328 = vadd.f32 %v1326, %v1327
        %v1329 = vrot.slane %v1328, 2
        %v1330 = vadd.f32 %v1328, %v1329
        %v1331 = vrot.slane %v1330, 1
        %v1332 = vadd.f32 %v1330, %v1331
        %s1333 = sld [smem:[#allocation2]]
        %v1334 = vstv %s1333
        %v1335 = vadd.f32 %v1312, %v1334
        %v1336 = vadd.f32 %v1318, %v1334
        %v1337 = vadd.f32 %v1324, %v1334
        %v1338 = vadd.f32 %v1332, %v1334
        %v1343 = vcombine.low %v1335, %v1336
        %v1344 = vcombine.low %v1337, %v1338
        %v1346 = vunpack.c.l.s4 1966171168
        %v1347 = vunpack.c.0.s8 %v1346
        %v1348 = vlaneseq
        %v1349 = vshrl.u32 %v1348, 7
        %v1350 = vsub.s32 %v1347, %v1349
        %v1351 = vrot.slane %v1343, %v1350
        %v1353 = vunpack.c.l.s4 1966171168
        %v1354 = vunpack.c.0.s8 %v1353
        %v1355 = vlaneseq
        %v1356 = vshrl.u32 %v1355, 7
        %v1357 = vsub.s32 %v1354, %v1356
        %v1358 = vrot.slane %v1344, %v1357
        %v1359 = vcombine.low %v1351, %v1358
        %v1361 = vunpack.c.l.s4 1966171168
        %v1362 = vunpack.c.0.s8 %v1361
        %v1363 = vlaneseq
        %v1364 = vshrl.u32 %v1363, 7
        %v1365 = vsub.s32 %v1362, %v1364
        %v1366 = vrot.slane %v1359, %v1365
        %1367 = vrot.lane.b32.xlu0 %v1366, 127
        %v1368 = vpop.permute.xlu0 %1367
        %v1369 = vrot.slane %v1368, 1
        %v1370 = vsel %vm337, %v1368, %v1369
        %s1372 = scalar_lea.vmem %s238, 2
        %1373 = vst.msk [vmem:[%s1372] ss:$8 sm:$0x7] %vm884, %v1370
        %1374 = vst.msk [vmem:[%s1372] ss:$8 sm:$0x0] %vm884, %v1370
        %v1375 = vld [vmem:[%s3] sm:$0xff]
        %1377 = vset.pattern.permute.xlu0 1
        %1378 = vperm.xlu0 %1377, %v1375
        %v1379 = vpop.permute.xlu0 %1378
        %v1381 = vmul.f32 %v1291, %v1379
        %v1382 = vmul.f32 %v1292, %v1379
        %v1383 = vmul.f32 %v1293, %v1379
        %v1384 = vmul.f32 %v1294, %v1379
        %v1385 = vsel %vm1305, %v1381, 0.0
        %v1386 = vrot.slane %v1385, 4
        %v1387 = vadd.f32 %v1385, %v1386
        %v1388 = vrot.slane %v1387, 2
        %v1389 = vadd.f32 %v1387, %v1388
        %v1390 = vrot.slane %v1389, 1
        %v1391 = vadd.f32 %v1389, %v1390
        %v1392 = vrot.slane %v1382, 4
        %v1393 = vadd.f32 %v1382, %v1392
        %v1394 = vrot.slane %v1393, 2
        %v1395 = vadd.f32 %v1393, %v1394
        %v1396 = vrot.slane %v1395, 1
        %v1397 = vadd.f32 %v1395, %v1396
        %v1398 = vrot.slane %v1383, 4
        %v1399 = vadd.f32 %v1383, %v1398
        %v1400 = vrot.slane %v1399, 2
        %v1401 = vadd.f32 %v1399, %v1400
        %v1402 = vrot.slane %v1401, 1
        %v1403 = vadd.f32 %v1401, %v1402
        %v1404 = vsel %vm1325, %v1384, 0.0
        %v1405 = vrot.slane %v1404, 4
        %v1406 = vadd.f32 %v1404, %v1405
        %v1407 = vrot.slane %v1406, 2
        %v1408 = vadd.f32 %v1406, %v1407
        %v1409 = vrot.slane %v1408, 1
        %v1410 = vadd.f32 %v1408, %v1409
        %s1411 = sld [smem:[#allocation2 + $0x1]]
        %v1412 = vstv %s1411
        %v1413 = vadd.f32 %v1391, %v1412
        %v1414 = vadd.f32 %v1397, %v1412
        %v1415 = vadd.f32 %v1403, %v1412
        %v1416 = vadd.f32 %v1410, %v1412
        %v1421 = vcombine.low %v1413, %v1414
        %v1422 = vcombine.low %v1415, %v1416
        %v1424 = vunpack.c.l.s4 1966171168
        %v1425 = vunpack.c.0.s8 %v1424
        %v1426 = vlaneseq
        %v1427 = vshrl.u32 %v1426, 7
        %v1428 = vsub.s32 %v1425, %v1427
        %v1429 = vrot.slane %v1421, %v1428
        %v1431 = vunpack.c.l.s4 1966171168
        %v1432 = vunpack.c.0.s8 %v1431
        %v1433 = vlaneseq
        %v1434 = vshrl.u32 %v1433, 7
        %v1435 = vsub.s32 %v1432, %v1434
        %v1436 = vrot.slane %v1422, %v1435
        %v1437 = vcombine.low %v1429, %v1436
        %v1439 = vunpack.c.l.s4 1966171168
        %v1440 = vunpack.c.0.s8 %v1439
        %v1441 = vlaneseq
        %v1442 = vshrl.u32 %v1441, 7
        %v1443 = vsub.s32 %v1440, %v1442
        %v1444 = vrot.slane %v1437, %v1443
        %1445 = vrot.lane.b32.xlu0 %v1444, 127
        %v1446 = vpop.permute.xlu0 %1445
        %v1447 = vrot.slane %v1446, 1
        %v1448 = vsel %vm337, %v1446, %v1447
        %s1450 = scalar_lea.vmem %s238, 3
        %1451 = vst.msk [vmem:[%s1450] ss:$8 sm:$0x7] %vm884, %v1448
        %1452 = vst.msk [vmem:[%s1450] ss:$8 sm:$0x0] %vm884, %v1448
        %v1453 = vld [vmem:[%s1] sm:$0xff]
        %1455 = vset.pattern.permute.xlu0 19
        %1456 = vperm.xlu0 %1455, %v1453
        %v1457 = vpop.permute.xlu0 %1456
        %v1459 = vmul.f32 %v1457, %v304
        %v1460 = vmul.f32 %v1457, %v308
        %v1461 = vmul.f32 %v1457, %v312
        %v1462 = vmul.f32 %v1457, %v316
        %1463 = vset.pattern.permute.xlu0 44
        %1464 = vperm.xlu0 %1463, %v1453
        %v1465 = vpop.permute.xlu0 %1464
        %v1467 = vmul.f32 %v1465, %v355
        %v1468 = vmul.f32 %v1465, %v359
        %v1469 = vmul.f32 %v1465, %v363
        %v1470 = vmul.f32 %v1465, %v367
        %v1471 = vadd.f32 %v1459, %v1467
        %v1472 = vadd.f32 %v1460, %v1468
        %v1473 = vadd.f32 %v1461, %v1469
        %v1474 = vadd.f32 %v1462, %v1470
        %1475 = vset.pattern.permute.xlu0 17
        %1476 = vperm.xlu0 %1475, %v1453
        %v1477 = vpop.permute.xlu0 %1476
        %v1479 = vmul.f32 %v1477, %v304
        %v1480 = vmul.f32 %v1477, %v308
        %v1481 = vmul.f32 %v1477, %v312
        %v1482 = vmul.f32 %v1477, %v316
        %1487 = vrot.lane.b32.xlu0 %v1479, 127
        %v1488 = vpop.permute.xlu0 %1487
        %1489 = vrot.lane.b32.xlu0 %v1480, 127
        %v1490 = vpop.permute.xlu0 %1489
        %1491 = vrot.lane.b32.xlu0 %v1481, 127
        %v1492 = vpop.permute.xlu0 %1491
        %1493 = vrot.lane.b32.xlu0 %v1482, 127
        %v1494 = vpop.permute.xlu0 %1493
        %v1495 = vsel %vm337, %v1488, %v1490
        %v1496 = vsel %vm337, %v1490, %v1492
        %v1497 = vsel %vm337, %v1492, %v1494
        %v1502 = vadd.f32 %v1471, %v1495
        %v1503 = vadd.f32 %v1472, %v1496
        %v1504 = vadd.f32 %v1473, %v1497
        %v1505 = vadd.f32 %v1474, %v1494
        %1506 = vset.pattern.permute.xlu0 42
        %1507 = vperm.xlu0 %1506, %v1453
        %v1508 = vpop.permute.xlu0 %1507
        %v1510 = vmul.f32 %v1508, %v355
        %v1511 = vmul.f32 %v1508, %v359
        %v1512 = vmul.f32 %v1508, %v363
        %v1513 = vmul.f32 %v1508, %v367
        %1518 = vrot.lane.b32.xlu0 %v1510, 127
        %v1519 = vpop.permute.xlu0 %1518
        %1520 = vrot.lane.b32.xlu0 %v1511, 127
        %v1521 = vpop.permute.xlu0 %1520
        %1522 = vrot.lane.b32.xlu0 %v1512, 127
        %v1523 = vpop.permute.xlu0 %1522
        %1524 = vrot.lane.b32.xlu0 %v1513, 127
        %v1525 = vpop.permute.xlu0 %1524
        %v1526 = vsel %vm337, %v1519, %v1521
        %v1527 = vsel %vm337, %v1521, %v1523
        %v1528 = vsel %vm337, %v1523, %v1525
        %v1533 = vadd.f32 %v1502, %v1526
        %v1534 = vadd.f32 %v1503, %v1527
        %v1535 = vadd.f32 %v1504, %v1528
        %v1536 = vadd.f32 %v1505, %v1525
        %1537 = vset.pattern.permute.xlu0 15
        %1538 = vperm.xlu0 %1537, %v1453
        %v1539 = vpop.permute.xlu0 %1538
        %v1541 = vmul.f32 %v1539, %v304
        %v1542 = vmul.f32 %v1539, %v308
        %v1543 = vmul.f32 %v1539, %v312
        %v1544 = vmul.f32 %v1539, %v316
        %1549 = vrot.lane.b32.xlu0 %v1541, 126
        %v1550 = vpop.permute.xlu0 %1549
        %1551 = vrot.lane.b32.xlu0 %v1542, 126
        %v1552 = vpop.permute.xlu0 %1551
        %1553 = vrot.lane.b32.xlu0 %v1543, 126
        %v1554 = vpop.permute.xlu0 %1553
        %1555 = vrot.lane.b32.xlu0 %v1544, 126
        %v1556 = vpop.permute.xlu0 %1555
        %v1557 = vsel %vm417, %v1550, %v1552
        %v1558 = vsel %vm417, %v1552, %v1554
        %v1559 = vsel %vm417, %v1554, %v1556
        %v1564 = vadd.f32 %v1533, %v1557
        %v1565 = vadd.f32 %v1534, %v1558
        %v1566 = vadd.f32 %v1535, %v1559
        %v1567 = vadd.f32 %v1536, %v1556
        %1568 = vset.pattern.permute.xlu0 40
        %1569 = vperm.xlu0 %1568, %v1453
        %v1570 = vpop.permute.xlu0 %1569
        %v1572 = vmul.f32 %v1570, %v355
        %v1573 = vmul.f32 %v1570, %v359
        %v1574 = vmul.f32 %v1570, %v363
        %v1575 = vmul.f32 %v1570, %v367
        %1580 = vrot.lane.b32.xlu0 %v1572, 126
        %v1581 = vpop.permute.xlu0 %1580
        %1582 = vrot.lane.b32.xlu0 %v1573, 126
        %v1583 = vpop.permute.xlu0 %1582
        %1584 = vrot.lane.b32.xlu0 %v1574, 126
        %v1585 = vpop.permute.xlu0 %1584
        %1586 = vrot.lane.b32.xlu0 %v1575, 126
        %v1587 = vpop.permute.xlu0 %1586
        %v1588 = vsel %vm417, %v1581, %v1583
        %v1589 = vsel %vm417, %v1583, %v1585
        %v1590 = vsel %vm417, %v1585, %v1587
        %v1595 = vadd.f32 %v1564, %v1588
        %v1596 = vadd.f32 %v1565, %v1589
        %v1597 = vadd.f32 %v1566, %v1590
        %v1598 = vadd.f32 %v1567, %v1587
        %1599 = vset.pattern.permute.xlu0 9
        %1600 = vperm.xlu0 %1599, %v1453
        %v1601 = vpop.permute.xlu0 %1600
        %v1603 = vmul.f32 %v1601, %v304
        %v1604 = vmul.f32 %v1601, %v308
        %v1605 = vmul.f32 %v1601, %v312
        %v1606 = vmul.f32 %v1601, %v316
        %1611 = vrot.lane.b32.xlu0 %v1603, 110
        %v1612 = vpop.permute.xlu0 %1611
        %1613 = vrot.lane.b32.xlu0 %v1604, 110
        %v1614 = vpop.permute.xlu0 %1613
        %1615 = vrot.lane.b32.xlu0 %v1605, 110
        %v1616 = vpop.permute.xlu0 %1615
        %1617 = vrot.lane.b32.xlu0 %v1606, 110
        %v1618 = vpop.permute.xlu0 %1617
        %v1619 = vsel %vm476, %v1612, %v1614
        %v1620 = vsel %vm476, %v1614, %v1616
        %v1621 = vsel %vm476, %v1616, %v1618
        %v1626 = vadd.f32 %v1595, %v1619
        %v1627 = vadd.f32 %v1596, %v1620
        %v1628 = vadd.f32 %v1597, %v1621
        %v1629 = vadd.f32 %v1598, %v1618
        %1630 = vset.pattern.permute.xlu0 34
        %1631 = vperm.xlu0 %1630, %v1453
        %v1632 = vpop.permute.xlu0 %1631
        %v1634 = vmul.f32 %v1632, %v355
        %v1635 = vmul.f32 %v1632, %v359
        %v1636 = vmul.f32 %v1632, %v363
        %v1637 = vmul.f32 %v1632, %v367
        %1642 = vrot.lane.b32.xlu0 %v1634, 110
        %v1643 = vpop.permute.xlu0 %1642
        %1644 = vrot.lane.b32.xlu0 %v1635, 110
        %v1645 = vpop.permute.xlu0 %1644
        %1646 = vrot.lane.b32.xlu0 %v1636, 110
        %v1647 = vpop.permute.xlu0 %1646
        %1648 = vrot.lane.b32.xlu0 %v1637, 110
        %v1649 = vpop.permute.xlu0 %1648
        %v1650 = vsel %vm476, %v1643, %v1645
        %v1651 = vsel %vm476, %v1645, %v1647
        %v1652 = vsel %vm476, %v1647, %v1649
        %v1657 = vadd.f32 %v1626, %v1650
        %v1658 = vadd.f32 %v1627, %v1651
        %v1659 = vadd.f32 %v1628, %v1652
        %v1660 = vadd.f32 %v1629, %v1649
        %1661 = vset.pattern.permute.xlu0 7
        %1662 = vperm.xlu0 %1661, %v1453
        %v1663 = vpop.permute.xlu0 %1662
        %v1665 = vmul.f32 %v1663, %v304
        %v1666 = vmul.f32 %v1663, %v308
        %v1667 = vmul.f32 %v1663, %v312
        %v1668 = vmul.f32 %v1663, %v316
        %1673 = vrot.lane.b32.xlu0 %v1665, 109
        %v1674 = vpop.permute.xlu0 %1673
        %1675 = vrot.lane.b32.xlu0 %v1666, 109
        %v1676 = vpop.permute.xlu0 %1675
        %1677 = vrot.lane.b32.xlu0 %v1667, 109
        %v1678 = vpop.permute.xlu0 %1677
        %1679 = vrot.lane.b32.xlu0 %v1668, 109
        %v1680 = vpop.permute.xlu0 %1679
        %v1681 = vsel %vm535, %v1674, %v1676
        %v1682 = vsel %vm535, %v1676, %v1678
        %v1683 = vsel %vm535, %v1678, %v1680
        %v1688 = vadd.f32 %v1657, %v1681
        %v1689 = vadd.f32 %v1658, %v1682
        %v1690 = vadd.f32 %v1659, %v1683
        %v1691 = vadd.f32 %v1660, %v1680
        %1692 = vset.pattern.permute.xlu0 32
        %1693 = vperm.xlu0 %1692, %v1453
        %v1694 = vpop.permute.xlu0 %1693
        %v1696 = vmul.f32 %v1694, %v355
        %v1697 = vmul.f32 %v1694, %v359
        %v1698 = vmul.f32 %v1694, %v363
        %v1699 = vmul.f32 %v1694, %v367
        %1704 = vrot.lane.b32.xlu0 %v1696, 109
        %v1705 = vpop.permute.xlu0 %1704
        %1706 = vrot.lane.b32.xlu0 %v1697, 109
        %v1707 = vpop.permute.xlu0 %1706
        %1708 = vrot.lane.b32.xlu0 %v1698, 109
        %v1709 = vpop.permute.xlu0 %1708
        %1710 = vrot.lane.b32.xlu0 %v1699, 109
        %v1711 = vpop.permute.xlu0 %1710
        %v1712 = vsel %vm535, %v1705, %v1707
        %v1713 = vsel %vm535, %v1707, %v1709
        %v1714 = vsel %vm535, %v1709, %v1711
        %v1719 = vadd.f32 %v1688, %v1712
        %v1720 = vadd.f32 %v1689, %v1713
        %v1721 = vadd.f32 %v1690, %v1714
        %v1722 = vadd.f32 %v1691, %v1711
        %1723 = vset.pattern.permute.xlu0 5
        %1724 = vperm.xlu0 %1723, %v1453
        %v1725 = vpop.permute.xlu0 %1724
        %v1727 = vmul.f32 %v1725, %v304
        %v1728 = vmul.f32 %v1725, %v308
        %v1729 = vmul.f32 %v1725, %v312
        %v1730 = vmul.f32 %v1725, %v316
        %1735 = vrot.lane.b32.xlu0 %v1727, 108
        %v1736 = vpop.permute.xlu0 %1735
        %1737 = vrot.lane.b32.xlu0 %v1728, 108
        %v1738 = vpop.permute.xlu0 %1737
        %1739 = vrot.lane.b32.xlu0 %v1729, 108
        %v1740 = vpop.permute.xlu0 %1739
        %1741 = vrot.lane.b32.xlu0 %v1730, 108
        %v1742 = vpop.permute.xlu0 %1741
        %v1743 = vsel %vm594, %v1736, %v1738
        %v1744 = vsel %vm594, %v1738, %v1740
        %v1745 = vsel %vm594, %v1740, %v1742
        %v1750 = vadd.f32 %v1719, %v1743
        %v1751 = vadd.f32 %v1720, %v1744
        %v1752 = vadd.f32 %v1721, %v1745
        %v1753 = vadd.f32 %v1722, %v1742
        %1754 = vset.pattern.permute.xlu0 30
        %1755 = vperm.xlu0 %1754, %v1453
        %v1756 = vpop.permute.xlu0 %1755
        %v1758 = vmul.f32 %v1756, %v355
        %v1759 = vmul.f32 %v1756, %v359
        %v1760 = vmul.f32 %v1756, %v363
        %v1761 = vmul.f32 %v1756, %v367
        %1766 = vrot.lane.b32.xlu0 %v1758, 108
        %v1767 = vpop.permute.xlu0 %1766
        %1768 = vrot.lane.b32.xlu0 %v1759, 108
        %v1769 = vpop.permute.xlu0 %1768
        %1770 = vrot.lane.b32.xlu0 %v1760, 108
        %v1771 = vpop.permute.xlu0 %1770
        %1772 = vrot.lane.b32.xlu0 %v1761, 108
        %v1773 = vpop.permute.xlu0 %1772
        %v1774 = vsel %vm594, %v1767, %v1769
        %v1775 = vsel %vm594, %v1769, %v1771
        %v1776 = vsel %vm594, %v1771, %v1773
        %v1781 = vadd.f32 %v1750, %v1774
        %v1782 = vadd.f32 %v1751, %v1775
        %v1783 = vadd.f32 %v1752, %v1776
        %v1784 = vadd.f32 %v1753, %v1773
        %v1785 = vld [vmem:[%s2] sm:$0xff]
        %1787 = vset.pattern.permute.xlu0 0
        %1788 = vperm.xlu0 %1787, %v1785
        %v1789 = vpop.permute.xlu0 %1788
        %v1791 = vadd.f32 %v1781, %v1789
        %v1792 = vadd.f32 %v1782, %v1789
        %v1793 = vadd.f32 %v1783, %v1789
        %v1794 = vadd.f32 %v1784, %v1789
        %v1795 = vtanh.pop %v1791
        %v1796 = vtanh.pop %v1792
        %v1797 = vtanh.pop %v1793
        %v1798 = vtanh.pop %v1794
        %v1799 = vld [vmem:[%s3] sm:$0xff]
        %1801 = vset.pattern.permute.xlu0 0
        %1802 = vperm.xlu0 %1801, %v1799
        %v1803 = vpop.permute.xlu0 %1802
        %v1805 = vmul.f32 %v1795, %v1803
        %v1806 = vmul.f32 %v1796, %v1803
        %v1807 = vmul.f32 %v1797, %v1803
        %v1808 = vmul.f32 %v1798, %v1803
        %vm1809 = vcmask 1047696
        %v1810 = vsel %vm1809, %v1805, 0.0
        %v1811 = vrot.slane %v1810, 4
        %v1812 = vadd.f32 %v1810, %v1811
        %v1813 = vrot.slane %v1812, 2
        %v1814 = vadd.f32 %v1812, %v1813
        %v1815 = vrot.slane %v1814, 1
        %v1816 = vadd.f32 %v1814, %v1815
        %v1817 = vrot.slane %v1806, 4
        %v1818 = vadd.f32 %v1806, %v1817
        %v1819 = vrot.slane %v1818, 2
        %v1820 = vadd.f32 %v1818, %v1819
        %v1821 = vrot.slane %v1820, 1
        %v1822 = vadd.f32 %v1820, %v1821
        %v1823 = vrot.slane %v1807, 4
        %v1824 = vadd.f32 %v1807, %v1823
        %v1825 = vrot.slane %v1824, 2
        %v1826 = vadd.f32 %v1824, %v1825
        %v1827 = vrot.slane %v1826, 1
        %v1828 = vadd.f32 %v1826, %v1827
        %vm1829 = vcmask 146432
        %v1830 = vsel %vm1829, %v1808, 0.0
        %v1831 = vrot.slane %v1830, 4
        %v1832 = vadd.f32 %v1830, %v1831
        %v1833 = vrot.slane %v1832, 2
        %v1834 = vadd.f32 %v1832, %v1833
        %v1835 = vrot.slane %v1834, 1
        %v1836 = vadd.f32 %v1834, %v1835
        %s1837 = sld [smem:[#allocation2]]
        %v1838 = vstv %s1837
        %v1839 = vadd.f32 %v1816, %v1838
        %v1840 = vadd.f32 %v1822, %v1838
        %v1841 = vadd.f32 %v1828, %v1838
        %v1842 = vadd.f32 %v1836, %v1838
        %v1847 = vcombine.low %v1839, %v1840
        %v1848 = vcombine.low %v1841, %v1842
        %v1850 = vunpack.c.l.s4 1966171168
        %v1851 = vunpack.c.0.s8 %v1850
        %v1852 = vlaneseq
        %v1853 = vshrl.u32 %v1852, 7
        %v1854 = vsub.s32 %v1851, %v1853
        %v1855 = vrot.slane %v1847, %v1854
        %v1857 = vunpack.c.l.s4 1966171168
        %v1858 = vunpack.c.0.s8 %v1857
        %v1859 = vlaneseq
        %v1860 = vshrl.u32 %v1859, 7
        %v1861 = vsub.s32 %v1858, %v1860
        %v1862 = vrot.slane %v1848, %v1861
        %v1863 = vcombine.low %v1855, %v1862
        %v1865 = vunpack.c.l.s4 1966171168
        %v1866 = vunpack.c.0.s8 %v1865
        %v1867 = vlaneseq
        %v1868 = vshrl.u32 %v1867, 7
        %v1869 = vsub.s32 %v1866, %v1868
        %v1870 = vrot.slane %v1863, %v1869
        %1871 = vrot.lane.b32.xlu0 %v1870, 110
        %v1872 = vpop.permute.xlu0 %1871
        %v1873 = vrot.slane %v1872, 1
        %v1874 = vsel %vm476, %v1872, %v1873
        %s1876 = scalar_lea.vmem %s238, 4
        %1877 = vst.msk [vmem:[%s1876] ss:$8 sm:$0x7] %vm884, %v1874
        %1878 = vst.msk [vmem:[%s1876] ss:$8 sm:$0x0] %vm884, %v1874
        %v1879 = vld [vmem:[%s3] sm:$0xff]
        %1881 = vset.pattern.permute.xlu0 1
        %1882 = vperm.xlu0 %1881, %v1879
        %v1883 = vpop.permute.xlu0 %1882
        %v1885 = vmul.f32 %v1795, %v1883
        %v1886 = vmul.f32 %v1796, %v1883
        %v1887 = vmul.f32 %v1797, %v1883
        %v1888 = vmul.f32 %v1798, %v1883
        %v1889 = vsel %vm1809, %v1885, 0.0
        %v1890 = vrot.slane %v1889, 4
        %v1891 = vadd.f32 %v1889, %v1890
        %v1892 = vrot.slane %v1891, 2
        %v1893 = vadd.f32 %v1891, %v1892
        %v1894 = vrot.slane %v1893, 1
        %v1895 = vadd.f32 %v1893, %v1894
        %v1896 = vrot.slane %v1886, 4
        %v1897 = vadd.f32 %v1886, %v1896
        %v1898 = vrot.slane %v1897, 2
        %v1899 = vadd.f32 %v1897, %v1898
        %v1900 = vrot.slane %v1899, 1
        %v1901 = vadd.f32 %v1899, %v1900
        %v1902 = vrot.slane %v1887, 4
        %v1903 = vadd.f32 %v1887, %v1902
        %v1904 = vrot.slane %v1903, 2
        %v1905 = vadd.f32 %v1903, %v1904
        %v1906 = vrot.slane %v1905, 1
        %v1907 = vadd.f32 %v1905, %v1906
        %v1908 = vsel %vm1829, %v1888, 0.0
        %v1909 = vrot.slane %v1908, 4
        %v1910 = vadd.f32 %v1908, %v1909
        %v1911 = vrot.slane %v1910, 2
        %v1912 = vadd.f32 %v1910, %v1911
        %v1913 = vrot.slane %v1912, 1
        %v1914 = vadd.f32 %v1912, %v1913
        %s1915 = sld [smem:[#allocation2 + $0x1]]
        %v1916 = vstv %s1915
        %v1917 = vadd.f32 %v1895, %v1916
        %v1918 = vadd.f32 %v1901, %v1916
        %v1919 = vadd.f32 %v1907, %v1916
        %v1920 = vadd.f32 %v1914, %v1916
        %v1925 = vcombine.low %v1917, %v1918
        %v1926 = vcombine.low %v1919, %v1920
        %v1928 = vunpack.c.l.s4 1966171168
        %v1929 = vunpack.c.0.s8 %v1928
        %v1930 = vlaneseq
        %v1931 = vshrl.u32 %v1930, 7
        %v1932 = vsub.s32 %v1929, %v1931
        %v1933 = vrot.slane %v1925, %v1932
        %v1935 = vunpack.c.l.s4 1966171168
        %v1936 = vunpack.c.0.s8 %v1935
        %v1937 = vlaneseq
        %v1938 = vshrl.u32 %v1937, 7
        %v1939 = vsub.s32 %v1936, %v1938
        %v1940 = vrot.slane %v1926, %v1939
        %v1941 = vcombine.low %v1933, %v1940
        %v1943 = vunpack.c.l.s4 1966171168
        %v1944 = vunpack.c.0.s8 %v1943
        %v1945 = vlaneseq
        %v1946 = vshrl.u32 %v1945, 7
        %v1947 = vsub.s32 %v1944, %v1946
        %v1948 = vrot.slane %v1941, %v1947
        %1949 = vrot.lane.b32.xlu0 %v1948, 110
        %v1950 = vpop.permute.xlu0 %1949
        %v1951 = vrot.slane %v1950, 1
        %v1952 = vsel %vm476, %v1950, %v1951
        %s1954 = scalar_lea.vmem %s238, 5
        %1955 = vst.msk [vmem:[%s1954] ss:$8 sm:$0x7] %vm884, %v1952
        %1956 = vst.msk [vmem:[%s1954] ss:$8 sm:$0x0] %vm884, %v1952
        %v1957 = vld [vmem:[%s1] sm:$0xff]
        %1959 = vset.pattern.permute.xlu0 18
        %1960 = vperm.xlu0 %1959, %v1957
        %v1961 = vpop.permute.xlu0 %1960
        %v1963 = vmul.f32 %v1961, %v304
        %v1964 = vmul.f32 %v1961, %v308
        %v1965 = vmul.f32 %v1961, %v312
        %v1966 = vmul.f32 %v1961, %v316
        %1967 = vset.pattern.permute.xlu0 43
        %1968 = vperm.xlu0 %1967, %v1957
        %v1969 = vpop.permute.xlu0 %1968
        %v1971 = vmul.f32 %v1969, %v355
        %v1972 = vmul.f32 %v1969, %v359
        %v1973 = vmul.f32 %v1969, %v363
        %v1974 = vmul.f32 %v1969, %v367
        %v1975 = vadd.f32 %v1963, %v1971
        %v1976 = vadd.f32 %v1964, %v1972
        %v1977 = vadd.f32 %v1965, %v1973
        %v1978 = vadd.f32 %v1966, %v1974
        %1979 = vset.pattern.permute.xlu0 16
        %1980 = vperm.xlu0 %1979, %v1957
        %v1981 = vpop.permute.xlu0 %1980
        %v1983 = vmul.f32 %v1981, %v304
        %v1984 = vmul.f32 %v1981, %v308
        %v1985 = vmul.f32 %v1981, %v312
        %v1986 = vmul.f32 %v1981, %v316
        %1991 = vrot.lane.b32.xlu0 %v1983, 127
        %v1992 = vpop.permute.xlu0 %1991
        %1993 = vrot.lane.b32.xlu0 %v1984, 127
        %v1994 = vpop.permute.xlu0 %1993
        %1995 = vrot.lane.b32.xlu0 %v1985, 127
        %v1996 = vpop.permute.xlu0 %1995
        %1997 = vrot.lane.b32.xlu0 %v1986, 127
        %v1998 = vpop.permute.xlu0 %1997
        %v1999 = vsel %vm337, %v1992, %v1994
        %v2000 = vsel %vm337, %v1994, %v1996
        %v2001 = vsel %vm337, %v1996, %v1998
        %v2006 = vadd.f32 %v1975, %v1999
        %v2007 = vadd.f32 %v1976, %v2000
        %v2008 = vadd.f32 %v1977, %v2001
        %v2009 = vadd.f32 %v1978, %v1998
        %2010 = vset.pattern.permute.xlu0 41
        %2011 = vperm.xlu0 %2010, %v1957
        %v2012 = vpop.permute.xlu0 %2011
        %v2014 = vmul.f32 %v2012, %v355
        %v2015 = vmul.f32 %v2012, %v359
        %v2016 = vmul.f32 %v2012, %v363
        %v2017 = vmul.f32 %v2012, %v367
        %2022 = vrot.lane.b32.xlu0 %v2014, 127
        %v2023 = vpop.permute.xlu0 %2022
        %2024 = vrot.lane.b32.xlu0 %v2015, 127
        %v2025 = vpop.permute.xlu0 %2024
        %2026 = vrot.lane.b32.xlu0 %v2016, 127
        %v2027 = vpop.permute.xlu0 %2026
        %2028 = vrot.lane.b32.xlu0 %v2017, 127
        %v2029 = vpop.permute.xlu0 %2028
        %v2030 = vsel %vm337, %v2023, %v2025
        %v2031 = vsel %vm337, %v2025, %v2027
        %v2032 = vsel %vm337, %v2027, %v2029
        %v2037 = vadd.f32 %v2006, %v2030
        %v2038 = vadd.f32 %v2007, %v2031
        %v2039 = vadd.f32 %v2008, %v2032
        %v2040 = vadd.f32 %v2009, %v2029
        %2041 = vset.pattern.permute.xlu0 8
        %2042 = vperm.xlu0 %2041, %v1957
        %v2043 = vpop.permute.xlu0 %2042
        %v2045 = vmul.f32 %v2043, %v304
        %v2046 = vmul.f32 %v2043, %v308
        %v2047 = vmul.f32 %v2043, %v312
        %v2048 = vmul.f32 %v2043, %v316
        %2053 = vrot.lane.b32.xlu0 %v2045, 110
        %v2054 = vpop.permute.xlu0 %2053
        %2055 = vrot.lane.b32.xlu0 %v2046, 110
        %v2056 = vpop.permute.xlu0 %2055
        %2057 = vrot.lane.b32.xlu0 %v2047, 110
        %v2058 = vpop.permute.xlu0 %2057
        %2059 = vrot.lane.b32.xlu0 %v2048, 110
        %v2060 = vpop.permute.xlu0 %2059
        %v2061 = vsel %vm476, %v2054, %v2056
        %v2062 = vsel %vm476, %v2056, %v2058
        %v2063 = vsel %vm476, %v2058, %v2060
        %v2068 = vadd.f32 %v2037, %v2061
        %v2069 = vadd.f32 %v2038, %v2062
        %v2070 = vadd.f32 %v2039, %v2063
        %v2071 = vadd.f32 %v2040, %v2060
        %2072 = vset.pattern.permute.xlu0 33
        %2073 = vperm.xlu0 %2072, %v1957
        %v2074 = vpop.permute.xlu0 %2073
        %v2076 = vmul.f32 %v2074, %v355
        %v2077 = vmul.f32 %v2074, %v359
        %v2078 = vmul.f32 %v2074, %v363
        %v2079 = vmul.f32 %v2074, %v367
        %2084 = vrot.lane.b32.xlu0 %v2076, 110
        %v2085 = vpop.permute.xlu0 %2084
        %2086 = vrot.lane.b32.xlu0 %v2077, 110
        %v2087 = vpop.permute.xlu0 %2086
        %2088 = vrot.lane.b32.xlu0 %v2078, 110
        %v2089 = vpop.permute.xlu0 %2088
        %2090 = vrot.lane.b32.xlu0 %v2079, 110
        %v2091 = vpop.permute.xlu0 %2090
        %v2092 = vsel %vm476, %v2085, %v2087
        %v2093 = vsel %vm476, %v2087, %v2089
        %v2094 = vsel %vm476, %v2089, %v2091
        %v2099 = vadd.f32 %v2068, %v2092
        %v2100 = vadd.f32 %v2069, %v2093
        %v2101 = vadd.f32 %v2070, %v2094
        %v2102 = vadd.f32 %v2071, %v2091
        %2103 = vset.pattern.permute.xlu0 6
        %2104 = vperm.xlu0 %2103, %v1957
        %v2105 = vpop.permute.xlu0 %2104
        %v2107 = vmul.f32 %v2105, %v304
        %v2108 = vmul.f32 %v2105, %v308
        %v2109 = vmul.f32 %v2105, %v312
        %v2110 = vmul.f32 %v2105, %v316
        %2115 = vrot.lane.b32.xlu0 %v2107, 109
        %v2116 = vpop.permute.xlu0 %2115
        %2117 = vrot.lane.b32.xlu0 %v2108, 109
        %v2118 = vpop.permute.xlu0 %2117
        %2119 = vrot.lane.b32.xlu0 %v2109, 109
        %v2120 = vpop.permute.xlu0 %2119
        %2121 = vrot.lane.b32.xlu0 %v2110, 109
        %v2122 = vpop.permute.xlu0 %2121
        %v2123 = vsel %vm535, %v2116, %v2118
        %v2124 = vsel %vm535, %v2118, %v2120
        %v2125 = vsel %vm535, %v2120, %v2122
        %v2130 = vadd.f32 %v2099, %v2123
        %v2131 = vadd.f32 %v2100, %v2124
        %v2132 = vadd.f32 %v2101, %v2125
        %v2133 = vadd.f32 %v2102, %v2122
        %2134 = vset.pattern.permute.xlu0 31
        %2135 = vperm.xlu0 %2134, %v1957
        %v2136 = vpop.permute.xlu0 %2135
        %v2138 = vmul.f32 %v2136, %v355
        %v2139 = vmul.f32 %v2136, %v359
        %v2140 = vmul.f32 %v2136, %v363
        %v2141 = vmul.f32 %v2136, %v367
        %2146 = vrot.lane.b32.xlu0 %v2138, 109
        %v2147 = vpop.permute.xlu0 %2146
        %2148 = vrot.lane.b32.xlu0 %v2139, 109
        %v2149 = vpop.permute.xlu0 %2148
        %2150 = vrot.lane.b32.xlu0 %v2140, 109
        %v2151 = vpop.permute.xlu0 %2150
        %2152 = vrot.lane.b32.xlu0 %v2141, 109
        %v2153 = vpop.permute.xlu0 %2152
        %v2154 = vsel %vm535, %v2147, %v2149
        %v2155 = vsel %vm535, %v2149, %v2151
        %v2156 = vsel %vm535, %v2151, %v2153
        %v2161 = vadd.f32 %v2130, %v2154
        %v2162 = vadd.f32 %v2131, %v2155
        %v2163 = vadd.f32 %v2132, %v2156
        %v2164 = vadd.f32 %v2133, %v2153
        %v2165 = vld [vmem:[%s2] sm:$0xff]
        %2167 = vset.pattern.permute.xlu0 0
        %2168 = vperm.xlu0 %2167, %v2165
        %v2169 = vpop.permute.xlu0 %2168
        %v2171 = vadd.f32 %v2161, %v2169
        %v2172 = vadd.f32 %v2162, %v2169
        %v2173 = vadd.f32 %v2163, %v2169
        %v2174 = vadd.f32 %v2164, %v2169
        %v2175 = vtanh.pop %v2171
        %v2176 = vtanh.pop %v2172
        %v2177 = vtanh.pop %v2173
        %v2178 = vtanh.pop %v2174
        %v2179 = vld [vmem:[%s3] sm:$0xff]
        %2181 = vset.pattern.permute.xlu0 0
        %2182 = vperm.xlu0 %2181, %v2179
        %v2183 = vpop.permute.xlu0 %2182
        %v2185 = vmul.f32 %v2175, %v2183
        %v2186 = vmul.f32 %v2176, %v2183
        %v2187 = vmul.f32 %v2177, %v2183
        %v2188 = vmul.f32 %v2178, %v2183
        %vm2189 = vcmask 1047704
        %v2190 = vsel %vm2189, %v2185, 0.0
        %v2191 = vrot.slane %v2190, 4
        %v2192 = vadd.f32 %v2190, %v2191
        %v2193 = vrot.slane %v2192, 2
        %v2194 = vadd.f32 %v2192, %v2193
        %v2195 = vrot.slane %v2194, 1
        %v2196 = vadd.f32 %v2194, %v2195
        %v2197 = vrot.slane %v2186, 4
        %v2198 = vadd.f32 %v2186, %v2197
        %v2199 = vrot.slane %v2198, 2
        %v2200 = vadd.f32 %v2198, %v2199
        %v2201 = vrot.slane %v2200, 1
        %v2202 = vadd.f32 %v2200, %v2201
        %v2203 = vrot.slane %v2187, 4
        %v2204 = vadd.f32 %v2187, %v2203
        %v2205 = vrot.slane %v2204, 2
        %v2206 = vadd.f32 %v2204, %v2205
        %v2207 = vrot.slane %v2206, 1
        %v2208 = vadd.f32 %v2206, %v2207
        %vm2209 = vcmask 154624
        %v2210 = vsel %vm2209, %v2188, 0.0
        %v2211 = vrot.slane %v2210, 4
        %v2212 = vadd.f32 %v2210, %v2211
        %v2213 = vrot.slane %v2212, 2
        %v2214 = vadd.f32 %v2212, %v2213
        %v2215 = vrot.slane %v2214, 1
        %v2216 = vadd.f32 %v2214, %v2215
        %s2217 = sld [smem:[#allocation2]]
        %v2218 = vstv %s2217
        %v2219 = vadd.f32 %v2196, %v2218
        %v2220 = vadd.f32 %v2202, %v2218
        %v2221 = vadd.f32 %v2208, %v2218
        %v2222 = vadd.f32 %v2216, %v2218
        %v2227 = vcombine.low %v2219, %v2220
        %v2228 = vcombine.low %v2221, %v2222
        %v2230 = vunpack.c.l.s4 1966171168
        %v2231 = vunpack.c.0.s8 %v2230
        %v2232 = vlaneseq
        %v2233 = vshrl.u32 %v2232, 7
        %v2234 = vsub.s32 %v2231, %v2233
        %v2235 = vrot.slane %v2227, %v2234
        %v2237 = vunpack.c.l.s4 1966171168
        %v2238 = vunpack.c.0.s8 %v2237
        %v2239 = vlaneseq
        %v2240 = vshrl.u32 %v2239, 7
        %v2241 = vsub.s32 %v2238, %v2240
        %v2242 = vrot.slane %v2228, %v2241
        %v2243 = vcombine.low %v2235, %v2242
        %v2245 = vunpack.c.l.s4 1966171168
        %v2246 = vunpack.c.0.s8 %v2245
        %v2247 = vlaneseq
        %v2248 = vshrl.u32 %v2247, 7
        %v2249 = vsub.s32 %v2246, %v2248
        %v2250 = vrot.slane %v2243, %v2249
        %2251 = vrot.lane.b32.xlu0 %v2250, 109
        %v2252 = vpop.permute.xlu0 %2251
        %v2253 = vrot.slane %v2252, 1
        %v2254 = vsel %vm535, %v2252, %v2253
        %s2256 = scalar_lea.vmem %s238, 6
        %2257 = vst.msk [vmem:[%s2256] ss:$8 sm:$0x7] %vm884, %v2254
        %2258 = vst.msk [vmem:[%s2256] ss:$8 sm:$0x0] %vm884, %v2254
        %v2259 = vld [vmem:[%s3] sm:$0xff]
        %2261 = vset.pattern.permute.xlu0 1
        %2262 = vperm.xlu0 %2261, %v2259
        %v2263 = vpop.permute.xlu0 %2262
        %v2265 = vmul.f32 %v2175, %v2263
        %v2266 = vmul.f32 %v2176, %v2263
        %v2267 = vmul.f32 %v2177, %v2263
        %v2268 = vmul.f32 %v2178, %v2263
        %v2269 = vsel %vm2189, %v2265, 0.0
        %v2270 = vrot.slane %v2269, 4
        %v2271 = vadd.f32 %v2269, %v2270
        %v2272 = vrot.slane %v2271, 2
        %v2273 = vadd.f32 %v2271, %v2272
        %v2274 = vrot.slane %v2273, 1
        %v2275 = vadd.f32 %v2273, %v2274
        %v2276 = vrot.slane %v2266, 4
        %v2277 = vadd.f32 %v2266, %v2276
        %v2278 = vrot.slane %v2277, 2
        %v2279 = vadd.f32 %v2277, %v2278
        %v2280 = vrot.slane %v2279, 1
        %v2281 = vadd.f32 %v2279, %v2280
        %v2282 = vrot.slane %v2267, 4
        %v2283 = vadd.f32 %v2267, %v2282
        %v2284 = vrot.slane %v2283, 2
        %v2285 = vadd.f32 %v2283, %v2284
        %v2286 = vrot.slane %v2285, 1
        %v2287 = vadd.f32 %v2285, %v2286
        %v2288 = vsel %vm2209, %v2268, 0.0
        %v2289 = vrot.slane %v2288, 4
        %v2290 = vadd.f32 %v2288, %v2289
        %v2291 = vrot.slane %v2290, 2
        %v2292 = vadd.f32 %v2290, %v2291
        %v2293 = vrot.slane %v2292, 1
        %v2294 = vadd.f32 %v2292, %v2293
        %s2295 = sld [smem:[#allocation2 + $0x1]]
        %v2296 = vstv %s2295
        %v2297 = vadd.f32 %v2275, %v2296
        %v2298 = vadd.f32 %v2281, %v2296
        %v2299 = vadd.f32 %v2287, %v2296
        %v2300 = vadd.f32 %v2294, %v2296
        %v2305 = vcombine.low %v2297, %v2298
        %v2306 = vcombine.low %v2299, %v2300
        %v2308 = vunpack.c.l.s4 1966171168
        %v2309 = vunpack.c.0.s8 %v2308
        %v2310 = vlaneseq
        %v2311 = vshrl.u32 %v2310, 7
        %v2312 = vsub.s32 %v2309, %v2311
        %v2313 = vrot.slane %v2305, %v2312
        %v2315 = vunpack.c.l.s4 1966171168
        %v2316 = vunpack.c.0.s8 %v2315
        %v2317 = vlaneseq
        %v2318 = vshrl.u32 %v2317, 7
        %v2319 = vsub.s32 %v2316, %v2318
        %v2320 = vrot.slane %v2306, %v2319
        %v2321 = vcombine.low %v2313, %v2320
        %v2323 = vunpack.c.l.s4 1966171168
        %v2324 = vunpack.c.0.s8 %v2323
        %v2325 = vlaneseq
        %v2326 = vshrl.u32 %v2325, 7
        %v2327 = vsub.s32 %v2324, %v2326
        %v2328 = vrot.slane %v2321, %v2327
        %2329 = vrot.lane.b32.xlu0 %v2328, 109
        %v2330 = vpop.permute.xlu0 %2329
        %v2331 = vrot.slane %v2330, 1
        %v2332 = vsel %vm535, %v2330, %v2331
        %s2334 = scalar_lea.vmem %s238, 7
        %2335 = vst.msk [vmem:[%s2334] ss:$8 sm:$0x7] %vm884, %v2332
        %2336 = vst.msk [vmem:[%s2334] ss:$8 sm:$0x0] %vm884, %v2332
        %p2337 = scmp.lt.s32.totalorder %s17, 1
        %s2338 = scalar_select %p2337, %s17, 1
        %s2339 = smul.addr %s2338, 3
        %s2340 = smul.addr %s2339, 8
        %s2341 = scalar_lea.vmem %s5, %s2340
        // Predicated region
        $region45: #{upscaler_burgers.1} parent=39 // pred_check
          %p2342 = pneg %p145
        $region46: #{upscaler_burgers.1} parent=39 // pred_check_branch
          %2344 = sbr.rel (%p2342) target = $region48
        $region47: #{upscaler_burgers.1} parent=39 // pred_region
          _
        $region48: #{upscaler_burgers.1} parent=39 // pred_fallthru
          _
      $region40: #{upscaler_burgers.1} parent=5 // pred_fallthru
        _
      %p2345 = scmp.le.s32.totalorder 2, %s12
      // Predicated region
      $region49: #{upscaler_burgers.1} parent=5 // pred_check
        %p2346 = pneg %p2345
      $region50: #{upscaler_burgers.1} parent=5 // pred_check_branch
        %2348 = sbr.rel (%p2346) target = $region52
      $region51: #{upscaler_burgers.1} parent=5 // pred_region
        %s2349 = ssub.s32 %s12, 2
        // Predicated region
        $region53: #{upscaler_burgers.1} parent=51 // pred_check
          %p2350 = pneg %p151
        $region54: #{upscaler_burgers.1} parent=51 // pred_check_branch
          %2352 = sbr.rel (%p2350) target = $region56
        $region55: #{upscaler_burgers.1} parent=51 // pred_region
          %p2353 = scmp.lt.s32.totalorder %s18, 1
          %s2354 = scalar_select %p2353, %s18, 1
          %s2355 = smul.addr %s2354, 3
          %s2356 = smul.addr %s2355, 8
          %s2357 = scalar_lea.vmem %s5, %s2356
        $region56: #{upscaler_burgers.1} parent=51 // pred_fallthru
          _
      $region52: #{upscaler_burgers.1} parent=5 // pred_fallthru
        _
    $region6: #{upscaler_burgers.1} parent=1 // loop_footer
      %s16 = sadd.s32 1, %s12
    $region7: #{upscaler_burgers.1} parent=1 // loop_footer_branch
      %11 = sbr.rel target = $region3
    $region8: #{upscaler_burgers.1} parent=1 // loop_exit
      _
    %2358 = vsyncpa [#allocation3], 1
    %s2359 = scalar_lea.sflag [#allocation3], 1
    %2360 = vsyncpa %s2359, 1

</llo_original>
